<compile_context>
chip_gen: v6e
topology: v6e:2x2x1
jax: 0.10.0
libtpu: 0.0.40
codegen_flags: <defaults>
</compile_context>

<pallas_src>
import functools

import jax
import jax.numpy as jnp
from jax.experimental import pallas as pl
from jax.experimental.pallas import tpu as pltpu

LANE = 128      # TPU lane width; the batch dim is padded to a multiple of this.
SUBLANE = 8     # f32 sublane granularity; feature dims are padded to this only.
MAX_TB = 2048   # max lanes (batch rows) per grid step.


def _cdiv(a, b):
    return -(-a // b)


def _round_up(x, m):
    return _cdiv(x, m) * m


def _choose_tiling(batch):
    """Pick (TB, n_tiles): TB multiple of 128, >=2 tiles when possible (v7x)."""
    lanes = _cdiv(batch, LANE)
    max_tile_lanes = MAX_TB // LANE
    # At least enough tiles to respect MAX_TB, and at least 2 tiles when the
    # batch spans >=2 lane groups so both v7x TensorCores get work.
    n_tiles = max(_cdiv(lanes, max_tile_lanes), 2 if lanes >= 2 else 1)
    tile_lanes = _cdiv(lanes, n_tiles)
    return tile_lanes * LANE, n_tiles


def dqn_kernel(x_ref, w1_ref, b1_ref, w2_ref, b2_ref, w3_ref, b3_ref, out_ref):
    # Batch-in-lanes layout: x is (Dp, TB); weights are W^T, VMEM-resident.
    hp = jax.lax.Precision.HIGHEST
    x = x_ref[...]                                                   # (Dp, TB)
    h1 = jnp.tanh(
        jnp.dot(w1_ref[...], x, precision=hp,
                preferred_element_type=jnp.float32) + b1_ref[...])   # (H, TB)
    h2 = jnp.tanh(
        jnp.dot(w2_ref[...], h1, precision=hp,
                preferred_element_type=jnp.float32) + b2_ref[...])   # (H, TB)
    out = (jnp.dot(w3_ref[...], h2, precision=hp,
                   preferred_element_type=jnp.float32) + b3_ref[...])  # (Np, TB)
    out_ref[...] = out.astype(out_ref.dtype)  # lane-dense (Np, TB) store


def prepare_params(params):
    """Transpose weights to W^T (out, in) and sublane-pad, ONCE, host-side.

    Zero padding is exact: padded input rows of W1^T see zero-padded state rows,
    and padded output rows of W3^T / b3 produce zeros that are sliced off.
    """
    w1, b1 = params["w1"], params["b1"]   # (state_dim, H), (1, H)
    w2, b2 = params["w2"], params["b2"]   # (H, H),        (1, H)
    w3, b3 = params["w3"], params["b3"]   # (H, A),        (1, A)
    state_dim, hidden = w1.shape
    num_actions = w3.shape[1]
    Dp = _round_up(state_dim, SUBLANE)
    Np = _round_up(num_actions, SUBLANE)

    w1t = jnp.pad(w1.T.astype(jnp.float32), ((0, 0), (0, Dp - state_dim)))  # (H, Dp)
    b1c = b1.T.astype(jnp.float32)                                          # (H, 1)
    w2t = w2.T.astype(jnp.float32)                                          # (H, H)
    b2c = b2.T.astype(jnp.float32)                                          # (H, 1)
    w3t = jnp.pad(w3.T.astype(jnp.float32), ((0, Np - num_actions), (0, 0)))  # (Np, H)
    b3c = jnp.pad(b3.T.astype(jnp.float32), ((0, Np - num_actions), (0, 0)))  # (Np, 1)

    return {
        "w1t": w1t, "b1": b1c,
        "w2t": w2t, "b2": b2c,
        "w3t": w3t, "b3": b3c,
        # Python ints; extracted BEFORE the jit call so slices stay static.
        "state_dim": int(state_dim),
        "num_actions": int(num_actions),
    }


@functools.partial(jax.jit, static_argnames=("num_actions",))
def _dqn_forward_pallas(state, w1t, b1, w2t, b2, w3t, b3, *, num_actions):
    state = state.astype(jnp.float32)
    B, D = state.shape
    Dp = w1t.shape[1]   # padded input features (sublane multiple, e.g. 8)
    Np = w3t.shape[0]   # padded output rows (sublane multiple, e.g. 8)

    TB, n_tiles = _choose_tiling(B)        # all static (shape-derived) ints
    B_pad = TB * n_tiles

    # Transposed, batch-in-lanes activation stream: (Dp, B_pad), tiny vs (B,128).
    x_t = jnp.pad(state.T, ((0, Dp - D), (0, B_pad - B)))

    act_spec = lambda rows: pl.BlockSpec((rows, TB), lambda i: (0, i))
    res_spec = lambda arr: pl.BlockSpec(arr.shape, lambda i: (0, 0))

    out_t = pl.pallas_call(
        dqn_kernel,
        out_shape=jax.ShapeDtypeStruct((Np, B_pad), jnp.float32),
        grid=(n_tiles,),
        in_specs=[
            act_spec(Dp),
            res_spec(w1t), res_spec(b1),
            res_spec(w2t), res_spec(b2),
            res_spec(w3t), res_spec(b3),
        ],
        out_specs=act_spec(Np),
        compiler_params=pltpu.CompilerParams(
            dimension_semantics=("parallel",),
        ),
    )(x_t, w1t, b1, w2t, b2, w3t, b3)

    # Static slice bounds (num_actions is a static arg, B is shape-derived).
    return out_t[:num_actions, :B].T


def dqn_forward_pallas(state, prepared):
    return _dqn_forward_pallas(
        state,
        prepared["w1t"], prepared["b1"],
        prepared["w2t"], prepared["b2"],
        prepared["w3t"], prepared["b3"],
        num_actions=prepared["num_actions"],
    )


@jax.jit
def dqn_forward_reference(state, params):
    """Plain-XLA forward on the original (unpadded) params."""
    hp = jax.lax.Precision.HIGHEST
    x = state.astype(jnp.float32)
    h1 = jnp.tanh(jnp.dot(x, params["w1"], precision=hp) + params["b1"])
    h2 = jnp.tanh(jnp.dot(h1, params["w2"], precision=hp) + params["b2"])
    return jnp.dot(h2, params["w3"], precision=hp) + params["b3"]


def dqn_forward(state, params, prepared, tiny_batch_threshold=64):
    """Dispatch: Pallas kernel for replay-sized batches, plain XLA for tiny ones."""
    # TODO(synk): fuse the tiny-batch (action-selection) path into the RL step.
    if state.shape[0] < tiny_batch_threshold:
        return dqn_forward_reference(state, params)
    return dqn_forward_pallas(state, prepared)


def init_params(key, state_dim=3, hidden_size=32, num_actions=5):
    # PyTorch-style uniform(-1/sqrt(fan_in), 1/sqrt(fan_in)) init; weights are
    # stored as (in, out) so the reference computes x @ W + b.
    def linear(k, fan_in, fan_out):
        kw, kb = jax.random.split(k)
        bound = 1.0 / jnp.sqrt(fan_in)
        w = jax.random.uniform(kw, (fan_in, fan_out), jnp.float32, -bound, bound)
        b = jax.random.uniform(kb, (1, fan_out), jnp.float32, -bound, bound)
        return w, b

    k1, k2, k3 = jax.random.split(key, 3)
    w1, b1 = linear(k1, state_dim, hidden_size)
    w2, b2 = linear(k2, hidden_size, hidden_size)
    w3, b3 = linear(k3, hidden_size, num_actions)
    return {"w1": w1, "b1": b1, "w2": w2, "b2": b2, "w3": w3, "b3": b3}


if __name__ == "__main__":
    key = jax.random.PRNGKey(0)
    k_params, k_state, k_small = jax.random.split(key, 3)

    state_dim, hidden_size, num_actions = 3, 32, 5
    params = init_params(k_params, state_dim, hidden_size, num_actions)
    prepared = prepare_params(params)   # transpose + sublane-pad, done once

    # Replay-sized batch -> Pallas path (2 grid steps of 128 lanes each).
    batch = 256
    state = jax.random.normal(k_state, (batch, state_dim), jnp.float32)
    values = jax.block_until_ready(dqn_forward(state, params, prepared))
    ref = jax.block_until_ready(dqn_forward_reference(state, params))
    assert values.shape == (batch, num_actions)
    assert jnp.allclose(values, ref, atol=1e-4, rtol=1e-4), "mismatch vs reference"

    # Tiny action-selection batch -> plain-XLA path (launch-overhead bound in Pallas).
    small_state = jax.random.normal(k_small, (8, state_dim), jnp.float32)
    small_vals = jax.block_until_ready(dqn_forward(small_state, params, prepared))
    assert small_vals.shape == (8, num_actions)

    print("KERNEL_OK")
</pallas_src>

<mosaic_0001>
module attributes {stable_mosaic.version = 11 : i64} {
  func.func @dqn_kernel(%arg0: i32, %arg1: memref<8x128xf32, #tpu.memory_space<vmem>>, %arg2: memref<32x8xf32, #tpu.memory_space<vmem>>, %arg3: memref<32x1xf32, #tpu.memory_space<vmem>>, %arg4: memref<32x32xf32, #tpu.memory_space<vmem>>, %arg5: memref<32x1xf32, #tpu.memory_space<vmem>>, %arg6: memref<8x32xf32, #tpu.memory_space<vmem>>, %arg7: memref<8x1xf32, #tpu.memory_space<vmem>>, %arg8: memref<8x128xf32, #tpu.memory_space<vmem>>) attributes {dimension_semantics = [#tpu.dimension_semantics<parallel>], iteration_bounds = array<i64: 2>, scalar_prefetch = 0 : i64, scratch_operands = 0 : i64, tpu.core_type = #tpu.core_type<tc>, window_params = [{transform_indices = @transform_0, window_bounds = array<i64: 8, 128>}, {pipeline_mode = #tpu.pipeline_mode<synchronous>, transform_indices = @transform_1, window_bounds = array<i64: 32, 8>}, {pipeline_mode = #tpu.pipeline_mode<synchronous>, transform_indices = @transform_2, window_bounds = array<i64: 32, 1>}, {pipeline_mode = #tpu.pipeline_mode<synchronous>, transform_indices = @transform_3, window_bounds = array<i64: 32, 32>}, {pipeline_mode = #tpu.pipeline_mode<synchronous>, transform_indices = @transform_4, window_bounds = array<i64: 32, 1>}, {pipeline_mode = #tpu.pipeline_mode<synchronous>, transform_indices = @transform_5, window_bounds = array<i64: 8, 32>}, {pipeline_mode = #tpu.pipeline_mode<synchronous>, transform_indices = @transform_6, window_bounds = array<i64: 8, 1>}, {transform_indices = @transform_7, window_bounds = array<i64: 8, 128>}]} {
    %c0 = arith.constant 0 : index
    %c0_0 = arith.constant 0 : index
    %0 = vector.load %arg1[%c0, %c0_0] : memref<8x128xf32, #tpu.memory_space<vmem>>, vector<8x128xf32>
    %c0_1 = arith.constant 0 : index
    %c0_2 = arith.constant 0 : index
    %1 = vector.load %arg2[%c0_1, %c0_2] : memref<32x8xf32, #tpu.memory_space<vmem>>, vector<32x8xf32>
    %cst = arith.constant dense<0.000000e+00> : vector<32x128xf32>
    %2 = tpu.matmul %1, %0, %cst {dimension_numbers = #tpu.dot_dimension_numbers<[1], [0], [0], [1], [0, 0, 1, 1], [], []>, precision = #tpu.contract_precision<fp32>} : vector<32x8xf32>, vector<8x128xf32>, vector<32x128xf32> -> vector<32x128xf32>
    %c0_3 = arith.constant 0 : index
    %c0_4 = arith.constant 0 : index
    %3 = vector.load %arg3[%c0_3, %c0_4] : memref<32x1xf32, #tpu.memory_space<vmem>>, vector<32x1xf32>
    %4 = vector.broadcast %3 : vector<32x1xf32> to vector<32x128xf32>
    %5 = arith.addf %2, %4 : vector<32x128xf32>
    %6 = math.tanh %5 : vector<32x128xf32>
    %c0_5 = arith.constant 0 : index
    %c0_6 = arith.constant 0 : index
    %7 = vector.load %arg4[%c0_5, %c0_6] : memref<32x32xf32, #tpu.memory_space<vmem>>, vector<32x32xf32>
    %cst_7 = arith.constant dense<0.000000e+00> : vector<32x128xf32>
    %8 = tpu.matmul %7, %6, %cst_7 {dimension_numbers = #tpu.dot_dimension_numbers<[1], [0], [0], [1], [0, 0, 1, 1], [], []>, precision = #tpu.contract_precision<fp32>} : vector<32x32xf32>, vector<32x128xf32>, vector<32x128xf32> -> vector<32x128xf32>
    %c0_8 = arith.constant 0 : index
    %c0_9 = arith.constant 0 : index
    %9 = vector.load %arg5[%c0_8, %c0_9] : memref<32x1xf32, #tpu.memory_space<vmem>>, vector<32x1xf32>
    %10 = vector.broadcast %9 : vector<32x1xf32> to vector<32x128xf32>
    %11 = arith.addf %8, %10 : vector<32x128xf32>
    %12 = math.tanh %11 : vector<32x128xf32>
    %c0_10 = arith.constant 0 : index
    %c0_11 = arith.constant 0 : index
    %13 = vector.load %arg6[%c0_10, %c0_11] : memref<8x32xf32, #tpu.memory_space<vmem>>, vector<8x32xf32>
    %cst_12 = arith.constant dense<0.000000e+00> : vector<8x128xf32>
    %14 = tpu.matmul %13, %12, %cst_12 {dimension_numbers = #tpu.dot_dimension_numbers<[1], [0], [0], [1], [0, 0, 1, 1], [], []>, precision = #tpu.contract_precision<fp32>} : vector<8x32xf32>, vector<32x128xf32>, vector<8x128xf32> -> vector<8x128xf32>
    %c0_13 = arith.constant 0 : index
    %c0_14 = arith.constant 0 : index
    %15 = vector.load %arg7[%c0_13, %c0_14] : memref<8x1xf32, #tpu.memory_space<vmem>>, vector<8x1xf32>
    %16 = vector.broadcast %15 : vector<8x1xf32> to vector<8x128xf32>
    %17 = arith.addf %14, %16 : vector<8x128xf32>
    %c0_15 = arith.constant 0 : index
    %c0_16 = arith.constant 0 : index
    %18 = vector.load %arg8[%c0_15, %c0_16] : memref<8x128xf32, #tpu.memory_space<vmem>>, vector<8x128xf32>
    tpu.vector_store %arg8[%c0_15, %c0_16], %17 {strides = array<i32>} : memref<8x128xf32, #tpu.memory_space<vmem>>, vector<8x128xf32>,
    return
  }
  func.func @transform_0(%arg0: i32) -> (i32, i32) {
    %c0_i32 = arith.constant 0 : i32
    %c0_i32_0 = arith.constant 0 : i32
    return %c0_i32, %arg0 : i32, i32
  }
  func.func @transform_1(%arg0: i32) -> (i32, i32) {
    %c0_i32 = arith.constant 0 : i32
    %c0_i32_0 = arith.constant 0 : i32
    %c0_i32_1 = arith.constant 0 : i32
    return %c0_i32, %c0_i32_0 : i32, i32
  }
  func.func @transform_2(%arg0: i32) -> (i32, i32) {
    %c0_i32 = arith.constant 0 : i32
    %c0_i32_0 = arith.constant 0 : i32
    %c0_i32_1 = arith.constant 0 : i32
    return %c0_i32, %c0_i32_0 : i32, i32
  }
  func.func @transform_3(%arg0: i32) -> (i32, i32) {
    %c0_i32 = arith.constant 0 : i32
    %c0_i32_0 = arith.constant 0 : i32
    %c0_i32_1 = arith.constant 0 : i32
    return %c0_i32, %c0_i32_0 : i32, i32
  }
  func.func @transform_4(%arg0: i32) -> (i32, i32) {
    %c0_i32 = arith.constant 0 : i32
    %c0_i32_0 = arith.constant 0 : i32
    %c0_i32_1 = arith.constant 0 : i32
    return %c0_i32, %c0_i32_0 : i32, i32
  }
  func.func @transform_5(%arg0: i32) -> (i32, i32) {
    %c0_i32 = arith.constant 0 : i32
    %c0_i32_0 = arith.constant 0 : i32
    %c0_i32_1 = arith.constant 0 : i32
    return %c0_i32, %c0_i32_0 : i32, i32
  }
  func.func @transform_6(%arg0: i32) -> (i32, i32) {
    %c0_i32 = arith.constant 0 : i32
    %c0_i32_0 = arith.constant 0 : i32
    %c0_i32_1 = arith.constant 0 : i32
    return %c0_i32, %c0_i32_0 : i32, i32
  }
  func.func @transform_7(%arg0: i32) -> (i32, i32) {
    %c0_i32 = arith.constant 0 : i32
    %c0_i32_0 = arith.constant 0 : i32
    return %c0_i32, %arg0 : i32, i32
  }
}

</mosaic_0001>

<llo_original>
// kernel: _dqn_forward_pallas.1
$region0: #{_dqn_forward_pallas.1}
  #allocation0 [shape = 'u32[]', space=smem, size = 0x4, offset = 0x4, fixed_abs, tag = 'smem constant byte address 0x4 - core index']
  #allocation1 [shape = 'u32[144,128]{1,0:T(1,128)}', space=vmem, size = 0x12000, scoped, tag = 'internal scratch']
  %s0 = inlined_call_operand.vmem [shape: f32[8,256], index: 0, kind: input, shape index: {}]
  %s1 = inlined_call_operand.vmem [shape: f32[32,8], index: 1, kind: input, shape index: {}]
  %s2 = inlined_call_operand.vmem [shape: f32[32,1], index: 2, kind: input, shape index: {}]
  %s3 = inlined_call_operand.vmem [shape: f32[32,32], index: 3, kind: input, shape index: {}]
  %s4 = inlined_call_operand.vmem [shape: f32[32,1], index: 4, kind: input, shape index: {}]
  %s5 = inlined_call_operand.vmem [shape: f32[8,32], index: 5, kind: input, shape index: {}]
  %s6 = inlined_call_operand.vmem [shape: f32[8,1], index: 6, kind: input, shape index: {}]
  %s7 = inlined_call_operand.vmem [shape: f32[8,256], index: 7, kind: output, shape index: {}]
  %s8 = sld [smem:[#allocation0]]
  $region61: #{_dqn_forward_pallas.1} parent=0
    _
  %s10 = ssub.s32 1, %s8
  %s11 = scalar_select 0, %s10, %s8
  loop: start=0, step=1, limit=4
  $region2: #{_dqn_forward_pallas.1} parent=0 // loop_pre_header
    _
  $region3: #{_dqn_forward_pallas.1} parent=0 // loop_header
    %s13 = sphi 0, %s17
    %p14 = scmp.ge.s32.totalorder %s13, 4
    %s23 = sphi 0, %s25
    %s26 = sphi 0, %s23
    %s27 = sphi 0, %s26
    %s43 = sphi 0, %s27
    %s47 = sphi 0, %s47
    %s49 = sphi 0, %s47
    %s50 = sphi 0, %s49
    %s64 = sphi 0, %s50
    %s68 = sphi 0, %s68
    %s70 = sphi 0, %s68
    %s71 = sphi 0, %s70
    %s85 = sphi 0, %s71
    %s89 = sphi 0, %s89
    %s91 = sphi 0, %s89
    %s92 = sphi 0, %s91
    %s106 = sphi 0, %s92
    %s110 = sphi 0, %s110
    %s112 = sphi 0, %s110
    %s113 = sphi 0, %s112
    %s127 = sphi 0, %s113
    %s131 = sphi 0, %s131
    %s133 = sphi 0, %s131
    %s134 = sphi 0, %s133
    %s148 = sphi 0, %s134
    %s152 = sphi 0, %s152
    %s154 = sphi 0, %s152
    %s155 = sphi 0, %s154
    %s169 = sphi 0, %s155
    %s175 = sphi 0, %s177
    %s178 = sphi 0, %s175
    %s179 = sphi 0, %s178
    %s195 = sphi 0, %s179
  $region4: #{_dqn_forward_pallas.1} parent=0 // loop_header_branch
    %16 = sbr.rel (%p14) target = $region8
  $region5: #{_dqn_forward_pallas.1} parent=0 // loop_body
    %s18 = ssub.s32 %s13, 1
    %s19 = ssub.s32 %s13, 2
    %s20 = sadd.s32 %s13, 1
    %s21 = ssub.s32 %s13, %s20
    %p22 = scmp.eq.s32.totalorder %s21, 0
    %s24 = sadd.s32 %s23, 1
    %s25 = scalar_select %p22, %s23, %s24
    %p28 = pneg %p22
    %p29 = scmp.eq.s32.totalorder %s13, 1
    %p30 = por %p28, %p29
    %p31 = scmp.ne.s32.totalorder %s23, %s26
    %p32 = scmp.eq.s32.totalorder %s13, 0
    %p33 = por %p31, %p32
    %p34 = scmp.ne.s32.totalorder %s23, %s26
    %p35 = scmp.eq.s32.totalorder %s18, 1
    %p36 = por %p34, %p35
    %p37 = scmp.ne.s32.totalorder %s26, %s27
    %p38 = scmp.eq.s32.totalorder %s18, 0
    %p39 = por %p37, %p38
    %p40 = scmp.ne.s32.totalorder %s26, %s27
    %p41 = scmp.eq.s32.totalorder %s19, 1
    %p42 = por %p40, %p41
    %p44 = scmp.ne.s32.totalorder %s27, %s43
    %p45 = scmp.eq.s32.totalorder %s19, 0
    %p46 = por %p44, %p45
    %s48 = sadd.s32 %s47, 1
    %p51 = scmp.eq.s32.totalorder %s13, 1
    %p52 = scmp.ne.s32.totalorder %s47, %s49
    %p53 = scmp.eq.s32.totalorder %s13, 0
    %p54 = por %p52, %p53
    %p55 = scmp.ne.s32.totalorder %s47, %s49
    %p56 = scmp.eq.s32.totalorder %s18, 1
    %p57 = por %p55, %p56
    %p58 = scmp.ne.s32.totalorder %s49, %s50
    %p59 = scmp.eq.s32.totalorder %s18, 0
    %p60 = por %p58, %p59
    %p61 = scmp.ne.s32.totalorder %s49, %s50
    %p62 = scmp.eq.s32.totalorder %s19, 1
    %p63 = por %p61, %p62
    %p65 = scmp.ne.s32.totalorder %s50, %s64
    %p66 = scmp.eq.s32.totalorder %s19, 0
    %p67 = por %p65, %p66
    %s69 = sadd.s32 %s68, 1
    %p72 = scmp.eq.s32.totalorder %s13, 1
    %p73 = scmp.ne.s32.totalorder %s68, %s70
    %p74 = scmp.eq.s32.totalorder %s13, 0
    %p75 = por %p73, %p74
    %p76 = scmp.ne.s32.totalorder %s68, %s70
    %p77 = scmp.eq.s32.totalorder %s18, 1
    %p78 = por %p76, %p77
    %p79 = scmp.ne.s32.totalorder %s70, %s71
    %p80 = scmp.eq.s32.totalorder %s18, 0
    %p81 = por %p79, %p80
    %p82 = scmp.ne.s32.totalorder %s70, %s71
    %p83 = scmp.eq.s32.totalorder %s19, 1
    %p84 = por %p82, %p83
    %p86 = scmp.ne.s32.totalorder %s71, %s85
    %p87 = scmp.eq.s32.totalorder %s19, 0
    %p88 = por %p86, %p87
    %s90 = sadd.s32 %s89, 1
    %p93 = scmp.eq.s32.totalorder %s13, 1
    %p94 = scmp.ne.s32.totalorder %s89, %s91
    %p95 = scmp.eq.s32.totalorder %s13, 0
    %p96 = por %p94, %p95
    %p97 = scmp.ne.s32.totalorder %s89, %s91
    %p98 = scmp.eq.s32.totalorder %s18, 1
    %p99 = por %p97, %p98
    %p100 = scmp.ne.s32.totalorder %s91, %s92
    %p101 = scmp.eq.s32.totalorder %s18, 0
    %p102 = por %p100, %p101
    %p103 = scmp.ne.s32.totalorder %s91, %s92
    %p104 = scmp.eq.s32.totalorder %s19, 1
    %p105 = por %p103, %p104
    %p107 = scmp.ne.s32.totalorder %s92, %s106
    %p108 = scmp.eq.s32.totalorder %s19, 0
    %p109 = por %p107, %p108
    %s111 = sadd.s32 %s110, 1
    %p114 = scmp.eq.s32.totalorder %s13, 1
    %p115 = scmp.ne.s32.totalorder %s110, %s112
    %p116 = scmp.eq.s32.totalorder %s13, 0
    %p117 = por %p115, %p116
    %p118 = scmp.ne.s32.totalorder %s110, %s112
    %p119 = scmp.eq.s32.totalorder %s18, 1
    %p120 = por %p118, %p119
    %p121 = scmp.ne.s32.totalorder %s112, %s113
    %p122 = scmp.eq.s32.totalorder %s18, 0
    %p123 = por %p121, %p122
    %p124 = scmp.ne.s32.totalorder %s112, %s113
    %p125 = scmp.eq.s32.totalorder %s19, 1
    %p126 = por %p124, %p125
    %p128 = scmp.ne.s32.totalorder %s113, %s127
    %p129 = scmp.eq.s32.totalorder %s19, 0
    %p130 = por %p128, %p129
    %s132 = sadd.s32 %s131, 1
    %p135 = scmp.eq.s32.totalorder %s13, 1
    %p136 = scmp.ne.s32.totalorder %s131, %s133
    %p137 = scmp.eq.s32.totalorder %s13, 0
    %p138 = por %p136, %p137
    %p139 = scmp.ne.s32.totalorder %s131, %s133
    %p140 = scmp.eq.s32.totalorder %s18, 1
    %p141 = por %p139, %p140
    %p142 = scmp.ne.s32.totalorder %s133, %s134
    %p143 = scmp.eq.s32.totalorder %s18, 0
    %p144 = por %p142, %p143
    %p145 = scmp.ne.s32.totalorder %s133, %s134
    %p146 = scmp.eq.s32.totalorder %s19, 1
    %p147 = por %p145, %p146
    %p149 = scmp.ne.s32.totalorder %s134, %s148
    %p150 = scmp.eq.s32.totalorder %s19, 0
    %p151 = por %p149, %p150
    %s153 = sadd.s32 %s152, 1
    %p156 = scmp.eq.s32.totalorder %s13, 1
    %p157 = scmp.ne.s32.totalorder %s152, %s154
    %p158 = scmp.eq.s32.totalorder %s13, 0
    %p159 = por %p157, %p158
    %p160 = scmp.ne.s32.totalorder %s152, %s154
    %p161 = scmp.eq.s32.totalorder %s18, 1
    %p162 = por %p160, %p161
    %p163 = scmp.ne.s32.totalorder %s154, %s155
    %p164 = scmp.eq.s32.totalorder %s18, 0
    %p165 = por %p163, %p164
    %p166 = scmp.ne.s32.totalorder %s154, %s155
    %p167 = scmp.eq.s32.totalorder %s19, 1
    %p168 = por %p166, %p167
    %p170 = scmp.ne.s32.totalorder %s155, %s169
    %p171 = scmp.eq.s32.totalorder %s19, 0
    %p172 = por %p170, %p171
    %s173 = ssub.s32 %s13, %s20
    %p174 = scmp.eq.s32.totalorder %s173, 0
    %s176 = sadd.s32 %s175, 1
    %s177 = scalar_select %p174, %s175, %s176
    %p180 = pneg %p174
    %p181 = scmp.eq.s32.totalorder %s13, 1
    %p182 = por %p180, %p181
    %p183 = scmp.ne.s32.totalorder %s175, %s178
    %p184 = scmp.eq.s32.totalorder %s13, 0
    %p185 = por %p183, %p184
    %p186 = scmp.ne.s32.totalorder %s175, %s178
    %p187 = scmp.eq.s32.totalorder %s18, 1
    %p188 = por %p186, %p187
    %p189 = scmp.ne.s32.totalorder %s178, %s179
    %p190 = scmp.eq.s32.totalorder %s18, 0
    %p191 = por %p189, %p190
    %p192 = scmp.ne.s32.totalorder %s178, %s179
    %p193 = scmp.eq.s32.totalorder %s19, 1
    %p194 = por %p192, %p193
    %p196 = scmp.ne.s32.totalorder %s179, %s195
    %p197 = scmp.eq.s32.totalorder %s19, 0
    %p198 = por %p196, %p197
    %p199 = scmp.le.s32.totalorder 1, %s13
    %p200 = scmp.lt.s32.totalorder %s13, 3
    %p201 = pnand %p199, %p200
    %p202 = pneg %p201
    // Predicated region
    $region9: #{_dqn_forward_pallas.1} parent=5 // pred_check
      _
    $region10: #{_dqn_forward_pallas.1} parent=5 // pred_check_branch
      %204 = sbr.rel (%p201) target = $region12
    $region11: #{_dqn_forward_pallas.1} parent=5 // pred_region
      %s205 = ssub.s32 %s13, 1
      // Predicated region
      $region13: #{_dqn_forward_pallas.1} parent=11 // pred_check
        %p206 = pneg %p60
      $region14: #{_dqn_forward_pallas.1} parent=11 // pred_check_branch
        %208 = sbr.rel (%p206) target = $region16
      $region15: #{_dqn_forward_pallas.1} parent=11 // pred_region
        _
      $region16: #{_dqn_forward_pallas.1} parent=11 // pred_fallthru
        _
      // Predicated region
      $region17: #{_dqn_forward_pallas.1} parent=11 // pred_check
        %p209 = pneg %p81
      $region18: #{_dqn_forward_pallas.1} parent=11 // pred_check_branch
        %211 = sbr.rel (%p209) target = $region20
      $region19: #{_dqn_forward_pallas.1} parent=11 // pred_region
        _
      $region20: #{_dqn_forward_pallas.1} parent=11 // pred_fallthru
        _
      // Predicated region
      $region21: #{_dqn_forward_pallas.1} parent=11 // pred_check
        %p212 = pneg %p102
      $region22: #{_dqn_forward_pallas.1} parent=11 // pred_check_branch
        %214 = sbr.rel (%p212) target = $region24
      $region23: #{_dqn_forward_pallas.1} parent=11 // pred_region
        _
      $region24: #{_dqn_forward_pallas.1} parent=11 // pred_fallthru
        _
      // Predicated region
      $region25: #{_dqn_forward_pallas.1} parent=11 // pred_check
        %p215 = pneg %p123
      $region26: #{_dqn_forward_pallas.1} parent=11 // pred_check_branch
        %217 = sbr.rel (%p215) target = $region28
      $region27: #{_dqn_forward_pallas.1} parent=11 // pred_region
        _
      $region28: #{_dqn_forward_pallas.1} parent=11 // pred_fallthru
        _
      // Predicated region
      $region29: #{_dqn_forward_pallas.1} parent=11 // pred_check
        %p218 = pneg %p144
      $region30: #{_dqn_forward_pallas.1} parent=11 // pred_check_branch
        %220 = sbr.rel (%p218) target = $region32
      $region31: #{_dqn_forward_pallas.1} parent=11 // pred_region
        _
      $region32: #{_dqn_forward_pallas.1} parent=11 // pred_fallthru
        _
      // Predicated region
      $region33: #{_dqn_forward_pallas.1} parent=11 // pred_check
        %p221 = pneg %p165
      $region34: #{_dqn_forward_pallas.1} parent=11 // pred_check_branch
        %223 = sbr.rel (%p221) target = $region36
      $region35: #{_dqn_forward_pallas.1} parent=11 // pred_region
        _
      $region36: #{_dqn_forward_pallas.1} parent=11 // pred_fallthru
        _
    $region12: #{_dqn_forward_pallas.1} parent=5 // pred_fallthru
      _
    %p224 = scmp.lt.s32.totalorder %s13, 2
    // Predicated region
    $region37: #{_dqn_forward_pallas.1} parent=5 // pred_check
      %p225 = pneg %p224
    $region38: #{_dqn_forward_pallas.1} parent=5 // pred_check_branch
      %227 = sbr.rel (%p225) target = $region40
    $region39: #{_dqn_forward_pallas.1} parent=5 // pred_region
      // Predicated region
      $region41: #{_dqn_forward_pallas.1} parent=39 // pred_check
        %p228 = pneg %p33
      $region42: #{_dqn_forward_pallas.1} parent=39 // pred_check_branch
        %230 = sbr.rel (%p228) target = $region44
      $region43: #{_dqn_forward_pallas.1} parent=39 // pred_region
        %p231 = scmp.lt.s32.totalorder %s13, 1
        %s232 = scalar_select %p231, %s13, 1
        %s233 = smul.addr %s232, 8
        %s234 = scalar_lea.vmem %s0, %s233
      $region44: #{_dqn_forward_pallas.1} parent=39 // pred_fallthru
        _
    $region40: #{_dqn_forward_pallas.1} parent=5 // pred_fallthru
      _
    %p235 = scmp.le.s32.totalorder 1, %s13
    %p236 = scmp.lt.s32.totalorder %s13, 3
    %p237 = pnand %p235, %p236
    %p238 = pneg %p237
    // Predicated region
    $region45: #{_dqn_forward_pallas.1} parent=5 // pred_check
      _
    $region46: #{_dqn_forward_pallas.1} parent=5 // pred_check_branch
      %240 = sbr.rel (%p237) target = $region48
    $region47: #{_dqn_forward_pallas.1} parent=5 // pred_region
      %s241 = ssub.s32 %s13, 1
      %p242 = scmp.lt.s32.totalorder %s18, 1
      %s243 = scalar_select %p242, %s18, 1
      %s244 = smul.addr %s243, 8
      %s245 = scalar_lea.vmem %s0, %s244
      %p246 = pneg %p39
      %p247 = pneg %p36
      %p248 = pneg %p60
      %p249 = pneg %p57
      %p250 = pneg %p81
      %p251 = pneg %p78
      %p252 = pneg %p102
      %p253 = pneg %p99
      %p254 = pneg %p123
      %p255 = pneg %p120
      %p256 = pneg %p144
      %p257 = pneg %p141
      %p258 = pneg %p165
      %p259 = pneg %p162
      %p260 = pneg %p191
      %p261 = pneg %p188
      %p262 = scmp.lt.s32.totalorder %s18, 1
      %s263 = scalar_select %p262, %s18, 1
      %s264 = smul.addr %s263, 8
      %s265 = scalar_lea.vmem %s7, %s264
      %p266 = scmp.lt.s32.totalorder %s18, 1
      %s267 = scalar_select %p266, %s18, 1
      %s268 = smul.addr %s267, 8
      %s269 = scalar_lea.vmem %s0, %s268
      %p270 = scmp.lt.s32.totalorder %s18, 1
      %s271 = scalar_select %p270, %s18, 1
      %s272 = smul.addr %s271, 8
      %s273 = scalar_lea.vmem %s7, %s272
      %v274 = vld [vmem:[%s269] sm:$0xff]
      %v275 = vld [vmem:[%s1] sm:$0xff]
      %v276 = vld [vmem:[%s1 + $0x8] sm:$0xff]
      %v277 = vld [vmem:[%s1 + $0x10] sm:$0xff]
      %v278 = vld [vmem:[%s1 + $0x18] sm:$0xff]
      %v279 = vld [vmem:[%s2] sm:$0xff]
      %v280 = vld [vmem:[%s2 + $0x8] sm:$0xff]
      %v281 = vld [vmem:[%s2 + $0x10] sm:$0xff]
      %v282 = vld [vmem:[%s2 + $0x18] sm:$0xff]
      %284 = vset.pattern.permute.xlu0 0
      %285 = vperm.xlu0 %284, %v279
      %v286 = vpop.permute.xlu0 %285
      %289 = vset.pattern.permute.xlu0 0
      %290 = vperm.xlu0 %289, %v280
      %v291 = vpop.permute.xlu0 %290
      %294 = vset.pattern.permute.xlu0 0
      %295 = vperm.xlu0 %294, %v281
      %v296 = vpop.permute.xlu0 %295
      %299 = vset.pattern.permute.xlu0 0
      %300 = vperm.xlu0 %299, %v282
      %v301 = vpop.permute.xlu0 %300
      %vm303 = vcmask 64512
      %v305 = vsel %vm303, %v275, 0
      %v308 = vsel %vm303, %v276, 0
      %v311 = vsel %vm303, %v277, 0
      %v314 = vsel %vm303, %v278, 0
      %316 = vmatprep.subr.mxu0 0.0
      %317 = vmatpush1.msra.mxu0 0.0
      %318 = vmatprep.subr.mxu0 0.0
      %319 = vmatpush1.msra.mxu0 0.0
      %320 = vmatprep.subr.mxu0 0.0
      %321 = vmatpush1.msra.mxu0 0.0
      %322 = vmatprep.subr.mxu0 0.0
      %323 = vmatpush1.msra.mxu0 0.0
      %324 = vmatprep.subr.mxu0 0.0
      %325 = vmatpush1.msra.mxu0 0.0
      %326 = vmatprep.subr.mxu0 0.0
      %327 = vmatpush1.msra.mxu0 0.0
      %328 = vmatprep.subr.mxu0 0.0
      %329 = vmatpush1.msra.mxu0 0.0
      %330 = vmatprep.subr.mxu0 0.0
      %331 = vmatpush1.msra.mxu0 0.0
      %332 = vmatprep.subr.mxu0 0.0
      %333 = vmatpush1.msra.mxu0 0.0
      %334 = vmatprep.subr.mxu0 0.0
      %335 = vmatpush1.msra.mxu0 0.0
      %336 = vmatprep.subr.mxu0 0.0
      %337 = vmatpush1.msra.mxu0 0.0
      %338 = vmatprep.subr.mxu0 0.0
      %339 = vmatpush1.msra.mxu0 0.0
      %340 = vmatprep.subr.mxu0 0.0
      %341 = vmatpush1.msra.mxu0 0.0
      %342 = vmatprep.subr.mxu0 0.0
      %343 = vmatpush1.msra.mxu0 0.0
      %344 = vmatprep.subr.mxu0 0.0
      %345 = vmatpush1.msra.mxu0 0.0
      %346 = vmatprep.subr.mxu0 0.0
      %v347 = vand.u32 %v274, 4294901760
      %348 = vmatpush1.msra.mxu0 %v347
      %349 = vmatprep.subr.mxu0 0.0
      %350 = vmatpush2.msra.mxu0 0.0
      %351 = vmatprep.subr.mxu0 0.0
      %352 = vmatpush2.msra.mxu0 0.0
      %353 = vmatprep.subr.mxu0 0.0
      %354 = vmatpush2.msra.mxu0 0.0
      %355 = vmatprep.subr.mxu0 0.0
      %356 = vmatpush2.msra.mxu0 0.0
      %357 = vmatprep.subr.mxu0 0.0
      %358 = vmatpush2.msra.mxu0 0.0
      %359 = vmatprep.subr.mxu0 0.0
      %360 = vmatpush2.msra.mxu0 0.0
      %361 = vmatprep.subr.mxu0 0.0
      %362 = vmatpush2.msra.mxu0 0.0
      %363 = vmatprep.subr.mxu0 0.0
      %364 = vmatpush2.msra.mxu0 0.0
      %365 = vmatprep.subr.mxu0 0.0
      %366 = vmatpush2.msra.mxu0 0.0
      %367 = vmatprep.subr.mxu0 0.0
      %368 = vmatpush2.msra.mxu0 0.0
      %369 = vmatprep.subr.mxu0 0.0
      %370 = vmatpush2.msra.mxu0 0.0
      %371 = vmatprep.subr.mxu0 0.0
      %372 = vmatpush2.msra.mxu0 0.0
      %373 = vmatprep.subr.mxu0 0.0
      %374 = vmatpush2.msra.mxu0 0.0
      %375 = vmatprep.subr.mxu0 0.0
      %376 = vmatpush2.msra.mxu0 0.0
      %377 = vmatprep.subr.mxu0 0.0
      %378 = vmatpush2.msra.mxu0 0.0
      %379 = vmatprep.subr.mxu0 0.0
      %380 = vmatpush2.msra.mxu0 0.0
      %381 = vmatprep.mubr.f32.mxu0 0.0
      %v382 = vand.u32 %v305, 4294901760
      %v383 = vsub.f32 %v305, %v382
      %v384 = vand.u32 %v383, 4294901760
      %v385 = vsub.f32 %v383, %v384
      %v386 = vand.u32 %v385, 4294901760
      %387 = vmatmul.mubr.f32.gmra.mxu0 %v386
      %v388 = vpop.f32.mrf.mxu0
      %v389 = vadd.f32 %v286, %v388
      %v390 = vpop.f32.mrf.mxu0
      %391 = vmatprep.mubr.f32.mxu0 0.0
      %v392 = vand.u32 %v308, 4294901760
      %v393 = vsub.f32 %v308, %v392
      %v394 = vand.u32 %v393, 4294901760
      %v395 = vsub.f32 %v393, %v394
      %v396 = vand.u32 %v395, 4294901760
      %397 = vmatmul.mubr.f32.gmra.mxu0 %v396
      %v398 = vpop.f32.mrf.mxu0
      %v399 = vadd.f32 %v291, %v398
      %v400 = vpop.f32.mrf.mxu0
      %401 = vmatprep.mubr.f32.mxu0 0.0
      %v402 = vand.u32 %v311, 4294901760
      %v403 = vsub.f32 %v311, %v402
      %v404 = vand.u32 %v403, 4294901760
      %v405 = vsub.f32 %v403, %v404
      %v406 = vand.u32 %v405, 4294901760
      %407 = vmatmul.mubr.f32.gmra.mxu0 %v406
      %v408 = vpop.f32.mrf.mxu0
      %v409 = vadd.f32 %v296, %v408
      %v410 = vpop.f32.mrf.mxu0
      %411 = vmatprep.mubr.f32.mxu0 0.0
      %v412 = vand.u32 %v314, 4294901760
      %v413 = vsub.f32 %v314, %v412
      %v414 = vand.u32 %v413, 4294901760
      %v415 = vsub.f32 %v413, %v414
      %v416 = vand.u32 %v415, 4294901760
      %417 = vmatmul.mubr.f32.gmra.mxu0 %v416
      %v418 = vpop.f32.mrf.mxu0
      %v419 = vadd.f32 %v301, %v418
      %v420 = vpop.f32.mrf.mxu0
      %421 = vdwg.mxu0
      %422 = vmatprep.subr.mxu0 0.0
      %423 = vmatpush1.msra.mxu0 0.0
      %424 = vmatprep.subr.mxu0 0.0
      %425 = vmatpush1.msra.mxu0 0.0
      %426 = vmatprep.subr.mxu0 0.0
      %427 = vmatpush1.msra.mxu0 0.0
      %428 = vmatprep.subr.mxu0 0.0
      %429 = vmatpush1.msra.mxu0 0.0
      %430 = vmatprep.subr.mxu0 0.0
      %431 = vmatpush1.msra.mxu0 0.0
      %432 = vmatprep.subr.mxu0 0.0
      %433 = vmatpush1.msra.mxu0 0.0
      %434 = vmatprep.subr.mxu0 0.0
      %435 = vmatpush1.msra.mxu0 0.0
      %436 = vmatprep.subr.mxu0 0.0
      %437 = vmatpush1.msra.mxu0 0.0
      %438 = vmatprep.subr.mxu0 0.0
      %439 = vmatpush1.msra.mxu0 0.0
      %440 = vmatprep.subr.mxu0 0.0
      %441 = vmatpush1.msra.mxu0 0.0
      %442 = vmatprep.subr.mxu0 0.0
      %443 = vmatpush1.msra.mxu0 0.0
      %444 = vmatprep.subr.mxu0 0.0
      %445 = vmatpush1.msra.mxu0 0.0
      %446 = vmatprep.subr.mxu0 0.0
      %447 = vmatpush1.msra.mxu0 0.0
      %448 = vmatprep.subr.mxu0 0.0
      %449 = vmatpush1.msra.mxu0 0.0
      %450 = vmatprep.subr.mxu0 0.0
      %451 = vmatpush1.msra.mxu0 0.0
      %452 = vmatprep.subr.mxu0 0.0
      %v453 = vand.u32 %v274, 4294901760
      %v454 = vsub.f32 %v274, %v453
      %v455 = vand.u32 %v454, 4294901760
      %v456 = vsub.f32 %v454, %v455
      %v457 = vand.u32 %v456, 4294901760
      %458 = vmatpush1.msra.mxu0 %v457
      %459 = vmatprep.subr.mxu0 0.0
      %460 = vmatpush2.msra.mxu0 0.0
      %461 = vmatprep.subr.mxu0 0.0
      %462 = vmatpush2.msra.mxu0 0.0
      %463 = vmatprep.subr.mxu0 0.0
      %464 = vmatpush2.msra.mxu0 0.0
      %465 = vmatprep.subr.mxu0 0.0
      %466 = vmatpush2.msra.mxu0 0.0
      %467 = vmatprep.subr.mxu0 0.0
      %468 = vmatpush2.msra.mxu0 0.0
      %469 = vmatprep.subr.mxu0 0.0
      %470 = vmatpush2.msra.mxu0 0.0
      %471 = vmatprep.subr.mxu0 0.0
      %472 = vmatpush2.msra.mxu0 0.0
      %473 = vmatprep.subr.mxu0 0.0
      %474 = vmatpush2.msra.mxu0 0.0
      %475 = vmatprep.subr.mxu0 0.0
      %476 = vmatpush2.msra.mxu0 0.0
      %477 = vmatprep.subr.mxu0 0.0
      %478 = vmatpush2.msra.mxu0 0.0
      %479 = vmatprep.subr.mxu0 0.0
      %480 = vmatpush2.msra.mxu0 0.0
      %481 = vmatprep.subr.mxu0 0.0
      %482 = vmatpush2.msra.mxu0 0.0
      %483 = vmatprep.subr.mxu0 0.0
      %484 = vmatpush2.msra.mxu0 0.0
      %485 = vmatprep.subr.mxu0 0.0
      %486 = vmatpush2.msra.mxu0 0.0
      %487 = vmatprep.subr.mxu0 0.0
      %488 = vmatpush2.msra.mxu0 0.0
      %489 = vmatprep.subr.mxu0 0.0
      %490 = vmatpush2.msra.mxu0 0.0
      %491 = vmatprep.mubr.f32.mxu0 0.0
      %v492 = vand.u32 %v305, 4294901760
      %493 = vmatmul.mubr.f32.gmra.mxu0 %v492
      %v494 = vpop.f32.mrf.mxu0
      %v495 = vadd.f32 %v389, %v494
      %v496 = vpop.f32.mrf.mxu0
      %497 = vmatprep.mubr.f32.mxu0 0.0
      %v498 = vand.u32 %v308, 4294901760
      %499 = vmatmul.mubr.f32.gmra.mxu0 %v498
      %v500 = vpop.f32.mrf.mxu0
      %v501 = vadd.f32 %v399, %v500
      %v502 = vpop.f32.mrf.mxu0
      %503 = vmatprep.mubr.f32.mxu0 0.0
      %v504 = vand.u32 %v311, 4294901760
      %505 = vmatmul.mubr.f32.gmra.mxu0 %v504
      %v506 = vpop.f32.mrf.mxu0
      %v507 = vadd.f32 %v409, %v506
      %v508 = vpop.f32.mrf.mxu0
      %509 = vmatprep.mubr.f32.mxu0 0.0
      %v510 = vand.u32 %v314, 4294901760
      %511 = vmatmul.mubr.f32.gmra.mxu0 %v510
      %v512 = vpop.f32.mrf.mxu0
      %v513 = vadd.f32 %v419, %v512
      %v514 = vpop.f32.mrf.mxu0
      %515 = vdwg.mxu0
      %516 = vmatprep.subr.mxu0 0.0
      %517 = vmatpush1.msra.mxu0 0.0
      %518 = vmatprep.subr.mxu0 0.0
      %519 = vmatpush1.msra.mxu0 0.0
      %520 = vmatprep.subr.mxu0 0.0
      %521 = vmatpush1.msra.mxu0 0.0
      %522 = vmatprep.subr.mxu0 0.0
      %523 = vmatpush1.msra.mxu0 0.0
      %524 = vmatprep.subr.mxu0 0.0
      %525 = vmatpush1.msra.mxu0 0.0
      %526 = vmatprep.subr.mxu0 0.0
      %527 = vmatpush1.msra.mxu0 0.0
      %528 = vmatprep.subr.mxu0 0.0
      %529 = vmatpush1.msra.mxu0 0.0
      %530 = vmatprep.subr.mxu0 0.0
      %531 = vmatpush1.msra.mxu0 0.0
      %532 = vmatprep.subr.mxu0 0.0
      %533 = vmatpush1.msra.mxu0 0.0
      %534 = vmatprep.subr.mxu0 0.0
      %535 = vmatpush1.msra.mxu0 0.0
      %536 = vmatprep.subr.mxu0 0.0
      %537 = vmatpush1.msra.mxu0 0.0
      %538 = vmatprep.subr.mxu0 0.0
      %539 = vmatpush1.msra.mxu0 0.0
      %540 = vmatprep.subr.mxu0 0.0
      %541 = vmatpush1.msra.mxu0 0.0
      %542 = vmatprep.subr.mxu0 0.0
      %543 = vmatpush1.msra.mxu0 0.0
      %544 = vmatprep.subr.mxu0 0.0
      %545 = vmatpush1.msra.mxu0 0.0
      %546 = vmatprep.subr.mxu0 0.0
      %v547 = vand.u32 %v274, 4294901760
      %v548 = vsub.f32 %v274, %v547
      %549 = vmatpush1.msra.mxu0 %v548
      %550 = vmatprep.subr.mxu0 0.0
      %551 = vmatpush2.msra.mxu0 0.0
      %552 = vmatprep.subr.mxu0 0.0
      %553 = vmatpush2.msra.mxu0 0.0
      %554 = vmatprep.subr.mxu0 0.0
      %555 = vmatpush2.msra.mxu0 0.0
      %556 = vmatprep.subr.mxu0 0.0
      %557 = vmatpush2.msra.mxu0 0.0
      %558 = vmatprep.subr.mxu0 0.0
      %559 = vmatpush2.msra.mxu0 0.0
      %560 = vmatprep.subr.mxu0 0.0
      %561 = vmatpush2.msra.mxu0 0.0
      %562 = vmatprep.subr.mxu0 0.0
      %563 = vmatpush2.msra.mxu0 0.0
      %564 = vmatprep.subr.mxu0 0.0
      %565 = vmatpush2.msra.mxu0 0.0
      %566 = vmatprep.subr.mxu0 0.0
      %567 = vmatpush2.msra.mxu0 0.0
      %568 = vmatprep.subr.mxu0 0.0
      %569 = vmatpush2.msra.mxu0 0.0
      %570 = vmatprep.subr.mxu0 0.0
      %571 = vmatpush2.msra.mxu0 0.0
      %572 = vmatprep.subr.mxu0 0.0
      %573 = vmatpush2.msra.mxu0 0.0
      %574 = vmatprep.subr.mxu0 0.0
      %575 = vmatpush2.msra.mxu0 0.0
      %576 = vmatprep.subr.mxu0 0.0
      %577 = vmatpush2.msra.mxu0 0.0
      %578 = vmatprep.subr.mxu0 0.0
      %579 = vmatpush2.msra.mxu0 0.0
      %580 = vmatprep.subr.mxu0 0.0
      %581 = vmatpush2.msra.mxu0 0.0
      %582 = vmatprep.mubr.f32.mxu0 0.0
      %v583 = vand.u32 %v305, 4294901760
      %v584 = vsub.f32 %v305, %v583
      %585 = vmatmul.mubr.f32.gmra.mxu0 %v584
      %v586 = vpop.f32.mrf.mxu0
      %v587 = vadd.f32 %v495, %v586
      %v588 = vpop.f32.mrf.mxu0
      %589 = vmatprep.mubr.f32.mxu0 0.0
      %v590 = vand.u32 %v308, 4294901760
      %v591 = vsub.f32 %v308, %v590
      %592 = vmatmul.mubr.f32.gmra.mxu0 %v591
      %v593 = vpop.f32.mrf.mxu0
      %v594 = vadd.f32 %v501, %v593
      %v595 = vpop.f32.mrf.mxu0
      %596 = vmatprep.mubr.f32.mxu0 0.0
      %v597 = vand.u32 %v311, 4294901760
      %v598 = vsub.f32 %v311, %v597
      %599 = vmatmul.mubr.f32.gmra.mxu0 %v598
      %v600 = vpop.f32.mrf.mxu0
      %v601 = vadd.f32 %v507, %v600
      %v602 = vpop.f32.mrf.mxu0
      %603 = vmatprep.mubr.f32.mxu0 0.0
      %v604 = vand.u32 %v314, 4294901760
      %v605 = vsub.f32 %v314, %v604
      %606 = vmatmul.mubr.f32.gmra.mxu0 %v605
      %v607 = vpop.f32.mrf.mxu0
      %v608 = vadd.f32 %v513, %v607
      %v609 = vpop.f32.mrf.mxu0
      %610 = vdwg.mxu0
      %611 = vmatprep.subr.mxu0 0.0
      %612 = vmatpush1.msra.mxu0 0.0
      %613 = vmatprep.subr.mxu0 0.0
      %614 = vmatpush1.msra.mxu0 0.0
      %615 = vmatprep.subr.mxu0 0.0
      %616 = vmatpush1.msra.mxu0 0.0
      %617 = vmatprep.subr.mxu0 0.0
      %618 = vmatpush1.msra.mxu0 0.0
      %619 = vmatprep.subr.mxu0 0.0
      %620 = vmatpush1.msra.mxu0 0.0
      %621 = vmatprep.subr.mxu0 0.0
      %622 = vmatpush1.msra.mxu0 0.0
      %623 = vmatprep.subr.mxu0 0.0
      %624 = vmatpush1.msra.mxu0 0.0
      %625 = vmatprep.subr.mxu0 0.0
      %626 = vmatpush1.msra.mxu0 0.0
      %627 = vmatprep.subr.mxu0 0.0
      %628 = vmatpush1.msra.mxu0 0.0
      %629 = vmatprep.subr.mxu0 0.0
      %630 = vmatpush1.msra.mxu0 0.0
      %631 = vmatprep.subr.mxu0 0.0
      %632 = vmatpush1.msra.mxu0 0.0
      %633 = vmatprep.subr.mxu0 0.0
      %634 = vmatpush1.msra.mxu0 0.0
      %635 = vmatprep.subr.mxu0 0.0
      %636 = vmatpush1.msra.mxu0 0.0
      %637 = vmatprep.subr.mxu0 0.0
      %638 = vmatpush1.msra.mxu0 0.0
      %639 = vmatprep.subr.mxu0 0.0
      %640 = vmatpush1.msra.mxu0 0.0
      %641 = vmatprep.subr.mxu0 0.0
      %v642 = vand.u32 %v274, 4294901760
      %643 = vmatpush1.msra.mxu0 %v642
      %644 = vmatprep.subr.mxu0 0.0
      %645 = vmatpush2.msra.mxu0 0.0
      %646 = vmatprep.subr.mxu0 0.0
      %647 = vmatpush2.msra.mxu0 0.0
      %648 = vmatprep.subr.mxu0 0.0
      %649 = vmatpush2.msra.mxu0 0.0
      %650 = vmatprep.subr.mxu0 0.0
      %651 = vmatpush2.msra.mxu0 0.0
      %652 = vmatprep.subr.mxu0 0.0
      %653 = vmatpush2.msra.mxu0 0.0
      %654 = vmatprep.subr.mxu0 0.0
      %655 = vmatpush2.msra.mxu0 0.0
      %656 = vmatprep.subr.mxu0 0.0
      %657 = vmatpush2.msra.mxu0 0.0
      %658 = vmatprep.subr.mxu0 0.0
      %659 = vmatpush2.msra.mxu0 0.0
      %660 = vmatprep.subr.mxu0 0.0
      %661 = vmatpush2.msra.mxu0 0.0
      %662 = vmatprep.subr.mxu0 0.0
      %663 = vmatpush2.msra.mxu0 0.0
      %664 = vmatprep.subr.mxu0 0.0
      %665 = vmatpush2.msra.mxu0 0.0
      %666 = vmatprep.subr.mxu0 0.0
      %667 = vmatpush2.msra.mxu0 0.0
      %668 = vmatprep.subr.mxu0 0.0
      %669 = vmatpush2.msra.mxu0 0.0
      %670 = vmatprep.subr.mxu0 0.0
      %671 = vmatpush2.msra.mxu0 0.0
      %672 = vmatprep.subr.mxu0 0.0
      %673 = vmatpush2.msra.mxu0 0.0
      %674 = vmatprep.subr.mxu0 0.0
      %675 = vmatpush2.msra.mxu0 0.0
      %676 = vmatprep.mubr.f32.mxu0 0.0
      %v677 = vand.u32 %v305, 4294901760
      %v678 = vsub.f32 %v305, %v677
      %v679 = vand.u32 %v678, 4294901760
      %680 = vmatmul.mubr.f32.gmra.mxu0 %v679
      %v681 = vpop.f32.mrf.mxu0
      %v682 = vadd.f32 %v587, %v681
      %v683 = vpop.f32.mrf.mxu0
      %684 = vmatprep.mubr.f32.mxu0 0.0
      %v685 = vand.u32 %v308, 4294901760
      %v686 = vsub.f32 %v308, %v685
      %v687 = vand.u32 %v686, 4294901760
      %688 = vmatmul.mubr.f32.gmra.mxu0 %v687
      %v689 = vpop.f32.mrf.mxu0
      %v690 = vadd.f32 %v594, %v689
      %v691 = vpop.f32.mrf.mxu0
      %692 = vmatprep.mubr.f32.mxu0 0.0
      %v693 = vand.u32 %v311, 4294901760
      %v694 = vsub.f32 %v311, %v693
      %v695 = vand.u32 %v694, 4294901760
      %696 = vmatmul.mubr.f32.gmra.mxu0 %v695
      %v697 = vpop.f32.mrf.mxu0
      %v698 = vadd.f32 %v601, %v697
      %v699 = vpop.f32.mrf.mxu0
      %700 = vmatprep.mubr.f32.mxu0 0.0
      %v701 = vand.u32 %v314, 4294901760
      %v702 = vsub.f32 %v314, %v701
      %v703 = vand.u32 %v702, 4294901760
      %704 = vmatmul.mubr.f32.gmra.mxu0 %v703
      %v705 = vpop.f32.mrf.mxu0
      %v706 = vadd.f32 %v608, %v705
      %v707 = vpop.f32.mrf.mxu0
      %708 = vdwg.mxu0
      %709 = vmatprep.subr.mxu0 0.0
      %710 = vmatpush1.msra.mxu0 0.0
      %711 = vmatprep.subr.mxu0 0.0
      %712 = vmatpush1.msra.mxu0 0.0
      %713 = vmatprep.subr.mxu0 0.0
      %714 = vmatpush1.msra.mxu0 0.0
      %715 = vmatprep.subr.mxu0 0.0
      %716 = vmatpush1.msra.mxu0 0.0
      %717 = vmatprep.subr.mxu0 0.0
      %718 = vmatpush1.msra.mxu0 0.0
      %719 = vmatprep.subr.mxu0 0.0
      %720 = vmatpush1.msra.mxu0 0.0
      %721 = vmatprep.subr.mxu0 0.0
      %722 = vmatpush1.msra.mxu0 0.0
      %723 = vmatprep.subr.mxu0 0.0
      %724 = vmatpush1.msra.mxu0 0.0
      %725 = vmatprep.subr.mxu0 0.0
      %726 = vmatpush1.msra.mxu0 0.0
      %727 = vmatprep.subr.mxu0 0.0
      %728 = vmatpush1.msra.mxu0 0.0
      %729 = vmatprep.subr.mxu0 0.0
      %730 = vmatpush1.msra.mxu0 0.0
      %731 = vmatprep.subr.mxu0 0.0
      %732 = vmatpush1.msra.mxu0 0.0
      %733 = vmatprep.subr.mxu0 0.0
      %734 = vmatpush1.msra.mxu0 0.0
      %735 = vmatprep.subr.mxu0 0.0
      %736 = vmatpush1.msra.mxu0 0.0
      %737 = vmatprep.subr.mxu0 0.0
      %738 = vmatpush1.msra.mxu0 0.0
      %739 = vmatprep.subr.mxu0 0.0
      %v740 = vand.u32 %v274, 4294901760
      %v741 = vsub.f32 %v274, %v740
      %v742 = vand.u32 %v741, 4294901760
      %743 = vmatpush1.msra.mxu0 %v742
      %744 = vmatprep.subr.mxu0 0.0
      %745 = vmatpush2.msra.mxu0 0.0
      %746 = vmatprep.subr.mxu0 0.0
      %747 = vmatpush2.msra.mxu0 0.0
      %748 = vmatprep.subr.mxu0 0.0
      %749 = vmatpush2.msra.mxu0 0.0
      %750 = vmatprep.subr.mxu0 0.0
      %751 = vmatpush2.msra.mxu0 0.0
      %752 = vmatprep.subr.mxu0 0.0
      %753 = vmatpush2.msra.mxu0 0.0
      %754 = vmatprep.subr.mxu0 0.0
      %755 = vmatpush2.msra.mxu0 0.0
      %756 = vmatprep.subr.mxu0 0.0
      %757 = vmatpush2.msra.mxu0 0.0
      %758 = vmatprep.subr.mxu0 0.0
      %759 = vmatpush2.msra.mxu0 0.0
      %760 = vmatprep.subr.mxu0 0.0
      %761 = vmatpush2.msra.mxu0 0.0
      %762 = vmatprep.subr.mxu0 0.0
      %763 = vmatpush2.msra.mxu0 0.0
      %764 = vmatprep.subr.mxu0 0.0
      %765 = vmatpush2.msra.mxu0 0.0
      %766 = vmatprep.subr.mxu0 0.0
      %767 = vmatpush2.msra.mxu0 0.0
      %768 = vmatprep.subr.mxu0 0.0
      %769 = vmatpush2.msra.mxu0 0.0
      %770 = vmatprep.subr.mxu0 0.0
      %771 = vmatpush2.msra.mxu0 0.0
      %772 = vmatprep.subr.mxu0 0.0
      %773 = vmatpush2.msra.mxu0 0.0
      %774 = vmatprep.subr.mxu0 0.0
      %775 = vmatpush2.msra.mxu0 0.0
      %776 = vmatprep.mubr.f32.mxu0 0.0
      %v777 = vand.u32 %v305, 4294901760
      %778 = vmatmul.mubr.f32.gmra.mxu0 %v777
      %v779 = vpop.f32.mrf.mxu0
      %v780 = vadd.f32 %v682, %v779
      %v781 = vpop.f32.mrf.mxu0
      %782 = vmatprep.mubr.f32.mxu0 0.0
      %v783 = vand.u32 %v308, 4294901760
      %784 = vmatmul.mubr.f32.gmra.mxu0 %v783
      %v785 = vpop.f32.mrf.mxu0
      %v786 = vadd.f32 %v690, %v785
      %v787 = vpop.f32.mrf.mxu0
      %788 = vmatprep.mubr.f32.mxu0 0.0
      %v789 = vand.u32 %v311, 4294901760
      %790 = vmatmul.mubr.f32.gmra.mxu0 %v789
      %v791 = vpop.f32.mrf.mxu0
      %v792 = vadd.f32 %v698, %v791
      %v793 = vpop.f32.mrf.mxu0
      %794 = vmatprep.mubr.f32.mxu0 0.0
      %v795 = vand.u32 %v314, 4294901760
      %796 = vmatmul.mubr.f32.gmra.mxu0 %v795
      %v797 = vpop.f32.mrf.mxu0
      %v798 = vadd.f32 %v706, %v797
      %v799 = vpop.f32.mrf.mxu0
      %800 = vdwg.mxu0
      %801 = vmatprep.subr.mxu0 0.0
      %802 = vmatpush1.msra.mxu0 0.0
      %803 = vmatprep.subr.mxu0 0.0
      %804 = vmatpush1.msra.mxu0 0.0
      %805 = vmatprep.subr.mxu0 0.0
      %806 = vmatpush1.msra.mxu0 0.0
      %807 = vmatprep.subr.mxu0 0.0
      %808 = vmatpush1.msra.mxu0 0.0
      %809 = vmatprep.subr.mxu0 0.0
      %810 = vmatpush1.msra.mxu0 0.0
      %811 = vmatprep.subr.mxu0 0.0
      %812 = vmatpush1.msra.mxu0 0.0
      %813 = vmatprep.subr.mxu0 0.0
      %814 = vmatpush1.msra.mxu0 0.0
      %815 = vmatprep.subr.mxu0 0.0
      %816 = vmatpush1.msra.mxu0 0.0
      %817 = vmatprep.subr.mxu0 0.0
      %818 = vmatpush1.msra.mxu0 0.0
      %819 = vmatprep.subr.mxu0 0.0
      %820 = vmatpush1.msra.mxu0 0.0
      %821 = vmatprep.subr.mxu0 0.0
      %822 = vmatpush1.msra.mxu0 0.0
      %823 = vmatprep.subr.mxu0 0.0
      %824 = vmatpush1.msra.mxu0 0.0
      %825 = vmatprep.subr.mxu0 0.0
      %826 = vmatpush1.msra.mxu0 0.0
      %827 = vmatprep.subr.mxu0 0.0
      %828 = vmatpush1.msra.mxu0 0.0
      %829 = vmatprep.subr.mxu0 0.0
      %830 = vmatpush1.msra.mxu0 0.0
      %831 = vmatprep.subr.mxu0 0.0
      %v832 = vand.u32 %v274, 4294901760
      %833 = vmatpush1.msra.mxu0 %v832
      %834 = vmatprep.subr.mxu0 0.0
      %835 = vmatpush2.msra.mxu0 0.0
      %836 = vmatprep.subr.mxu0 0.0
      %837 = vmatpush2.msra.mxu0 0.0
      %838 = vmatprep.subr.mxu0 0.0
      %839 = vmatpush2.msra.mxu0 0.0
      %840 = vmatprep.subr.mxu0 0.0
      %841 = vmatpush2.msra.mxu0 0.0
      %842 = vmatprep.subr.mxu0 0.0
      %843 = vmatpush2.msra.mxu0 0.0
      %844 = vmatprep.subr.mxu0 0.0
      %845 = vmatpush2.msra.mxu0 0.0
      %846 = vmatprep.subr.mxu0 0.0
      %847 = vmatpush2.msra.mxu0 0.0
      %848 = vmatprep.subr.mxu0 0.0
      %849 = vmatpush2.msra.mxu0 0.0
      %850 = vmatprep.subr.mxu0 0.0
      %851 = vmatpush2.msra.mxu0 0.0
      %852 = vmatprep.subr.mxu0 0.0
      %853 = vmatpush2.msra.mxu0 0.0
      %854 = vmatprep.subr.mxu0 0.0
      %855 = vmatpush2.msra.mxu0 0.0
      %856 = vmatprep.subr.mxu0 0.0
      %857 = vmatpush2.msra.mxu0 0.0
      %858 = vmatprep.subr.mxu0 0.0
      %859 = vmatpush2.msra.mxu0 0.0
      %860 = vmatprep.subr.mxu0 0.0
      %861 = vmatpush2.msra.mxu0 0.0
      %862 = vmatprep.subr.mxu0 0.0
      %863 = vmatpush2.msra.mxu0 0.0
      %864 = vmatprep.subr.mxu0 0.0
      %865 = vmatpush2.msra.mxu0 0.0
      %866 = vmatprep.mubr.f32.mxu0 0.0
      %v867 = vand.u32 %v305, 4294901760
      %868 = vmatmul.mubr.f32.gmra.mxu0 %v867
      %v869 = vpop.f32.mrf.mxu0
      %v870 = vadd.f32 %v780, %v869
      %v871 = vpop.f32.mrf.mxu0
      %872 = vmatprep.mubr.f32.mxu0 0.0
      %v873 = vand.u32 %v308, 4294901760
      %874 = vmatmul.mubr.f32.gmra.mxu0 %v873
      %v875 = vpop.f32.mrf.mxu0
      %v876 = vadd.f32 %v786, %v875
      %v877 = vpop.f32.mrf.mxu0
      %878 = vmatprep.mubr.f32.mxu0 0.0
      %v879 = vand.u32 %v311, 4294901760
      %880 = vmatmul.mubr.f32.gmra.mxu0 %v879
      %v881 = vpop.f32.mrf.mxu0
      %v882 = vadd.f32 %v792, %v881
      %v883 = vpop.f32.mrf.mxu0
      %884 = vmatprep.mubr.f32.mxu0 0.0
      %v885 = vand.u32 %v314, 4294901760
      %886 = vmatmul.mubr.f32.gmra.mxu0 %v885
      %v887 = vpop.f32.mrf.mxu0
      %v888 = vadd.f32 %v798, %v887
      %v889 = vpop.f32.mrf.mxu0
      %890 = vdwg.mxu0
      %v891 = vtanh.pop %v870
      %v892 = vtanh.pop %v876
      %v893 = vtanh.pop %v882
      %v894 = vtanh.pop %v888
      %v895 = vld [vmem:[%s3] sm:$0xff]
      %v896 = vld [vmem:[%s3 + $0x8] sm:$0xff]
      %v897 = vld [vmem:[%s3 + $0x10] sm:$0xff]
      %v898 = vld [vmem:[%s3 + $0x18] sm:$0xff]
      %v899 = vld [vmem:[%s4] sm:$0xff]
      %v900 = vld [vmem:[%s4 + $0x8] sm:$0xff]
      %v901 = vld [vmem:[%s4 + $0x10] sm:$0xff]
      %v902 = vld [vmem:[%s4 + $0x18] sm:$0xff]
      %904 = vset.pattern.permute.xlu0 0
      %905 = vperm.xlu0 %904, %v899
      %v906 = vpop.permute.xlu0 %905
      %909 = vset.pattern.permute.xlu0 0
      %910 = vperm.xlu0 %909, %v900
      %v911 = vpop.permute.xlu0 %910
      %914 = vset.pattern.permute.xlu0 0
      %915 = vperm.xlu0 %914, %v901
      %v916 = vpop.permute.xlu0 %915
      %919 = vset.pattern.permute.xlu0 0
      %920 = vperm.xlu0 %919, %v902
      %v921 = vpop.permute.xlu0 %920
      %vm923 = vcmask 261120
      %v925 = vsel %vm923, %v895, 0
      %v928 = vsel %vm923, %v896, 0
      %v931 = vsel %vm923, %v897, 0
      %v934 = vsel %vm923, %v898, 0
      %936 = vmatprep.subr.mxu0 0.0
      %937 = vmatpush1.msra.mxu0 0.0
      %938 = vmatprep.subr.mxu0 0.0
      %939 = vmatpush1.msra.mxu0 0.0
      %940 = vmatprep.subr.mxu0 0.0
      %941 = vmatpush1.msra.mxu0 0.0
      %942 = vmatprep.subr.mxu0 0.0
      %943 = vmatpush1.msra.mxu0 0.0
      %944 = vmatprep.subr.mxu0 0.0
      %945 = vmatpush1.msra.mxu0 0.0
      %946 = vmatprep.subr.mxu0 0.0
      %947 = vmatpush1.msra.mxu0 0.0
      %948 = vmatprep.subr.mxu0 0.0
      %949 = vmatpush1.msra.mxu0 0.0
      %950 = vmatprep.subr.mxu0 0.0
      %951 = vmatpush1.msra.mxu0 0.0
      %952 = vmatprep.subr.mxu0 0.0
      %953 = vmatpush1.msra.mxu0 0.0
      %954 = vmatprep.subr.mxu0 0.0
      %955 = vmatpush1.msra.mxu0 0.0
      %956 = vmatprep.subr.mxu0 0.0
      %957 = vmatpush1.msra.mxu0 0.0
      %958 = vmatprep.subr.mxu0 0.0
      %959 = vmatpush1.msra.mxu0 0.0
      %960 = vmatprep.subr.mxu0 0.0
      %v961 = vand.u32 %v894, 4294901760
      %962 = vmatpush1.msra.mxu0 %v961
      %963 = vmatprep.subr.mxu0 0.0
      %v964 = vand.u32 %v893, 4294901760
      %965 = vmatpush1.msra.mxu0 %v964
      %966 = vmatprep.subr.mxu0 0.0
      %v967 = vand.u32 %v892, 4294901760
      %968 = vmatpush1.msra.mxu0 %v967
      %969 = vmatprep.subr.mxu0 0.0
      %v970 = vand.u32 %v891, 4294901760
      %971 = vmatpush1.msra.mxu0 %v970
      %972 = vmatprep.subr.mxu0 0.0
      %973 = vmatpush2.msra.mxu0 0.0
      %974 = vmatprep.subr.mxu0 0.0
      %975 = vmatpush2.msra.mxu0 0.0
      %976 = vmatprep.subr.mxu0 0.0
      %977 = vmatpush2.msra.mxu0 0.0
      %978 = vmatprep.subr.mxu0 0.0
      %979 = vmatpush2.msra.mxu0 0.0
      %980 = vmatprep.subr.mxu0 0.0
      %981 = vmatpush2.msra.mxu0 0.0
      %982 = vmatprep.subr.mxu0 0.0
      %983 = vmatpush2.msra.mxu0 0.0
      %984 = vmatprep.subr.mxu0 0.0
      %985 = vmatpush2.msra.mxu0 0.0
      %986 = vmatprep.subr.mxu0 0.0
      %987 = vmatpush2.msra.mxu0 0.0
      %988 = vmatprep.subr.mxu0 0.0
      %989 = vmatpush2.msra.mxu0 0.0
      %990 = vmatprep.subr.mxu0 0.0
      %991 = vmatpush2.msra.mxu0 0.0
      %992 = vmatprep.subr.mxu0 0.0
      %993 = vmatpush2.msra.mxu0 0.0
      %994 = vmatprep.subr.mxu0 0.0
      %995 = vmatpush2.msra.mxu0 0.0
      %996 = vmatprep.subr.mxu0 0.0
      %997 = vmatpush2.msra.mxu0 0.0
      %998 = vmatprep.subr.mxu0 0.0
      %999 = vmatpush2.msra.mxu0 0.0
      %1000 = vmatprep.subr.mxu0 0.0
      %1001 = vmatpush2.msra.mxu0 0.0
      %1002 = vmatprep.subr.mxu0 0.0
      %1003 = vmatpush2.msra.mxu0 0.0
      %1004 = vmatprep.mubr.f32.mxu0 0.0
      %v1005 = vand.u32 %v925, 4294901760
      %v1006 = vsub.f32 %v925, %v1005
      %v1007 = vand.u32 %v1006, 4294901760
      %v1008 = vsub.f32 %v1006, %v1007
      %v1009 = vand.u32 %v1008, 4294901760
      %1010 = vmatmul.mubr.f32.gmra.mxu0 %v1009
      %v1011 = vpop.f32.mrf.mxu0
      %v1012 = vadd.f32 %v906, %v1011
      %v1013 = vpop.f32.mrf.mxu0
      %1014 = vmatprep.mubr.f32.mxu0 0.0
      %v1015 = vand.u32 %v928, 4294901760
      %v1016 = vsub.f32 %v928, %v1015
      %v1017 = vand.u32 %v1016, 4294901760
      %v1018 = vsub.f32 %v1016, %v1017
      %v1019 = vand.u32 %v1018, 4294901760
      %1020 = vmatmul.mubr.f32.gmra.mxu0 %v1019
      %v1021 = vpop.f32.mrf.mxu0
      %v1022 = vadd.f32 %v911, %v1021
      %v1023 = vpop.f32.mrf.mxu0
      %1024 = vmatprep.mubr.f32.mxu0 0.0
      %v1025 = vand.u32 %v931, 4294901760
      %v1026 = vsub.f32 %v931, %v1025
      %v1027 = vand.u32 %v1026, 4294901760
      %v1028 = vsub.f32 %v1026, %v1027
      %v1029 = vand.u32 %v1028, 4294901760
      %1030 = vmatmul.mubr.f32.gmra.mxu0 %v1029
      %v1031 = vpop.f32.mrf.mxu0
      %v1032 = vadd.f32 %v916, %v1031
      %v1033 = vpop.f32.mrf.mxu0
      %1034 = vmatprep.mubr.f32.mxu0 0.0
      %v1035 = vand.u32 %v934, 4294901760
      %v1036 = vsub.f32 %v934, %v1035
      %v1037 = vand.u32 %v1036, 4294901760
      %v1038 = vsub.f32 %v1036, %v1037
      %v1039 = vand.u32 %v1038, 4294901760
      %1040 = vmatmul.mubr.f32.gmra.mxu0 %v1039
      %v1041 = vpop.f32.mrf.mxu0
      %v1042 = vadd.f32 %v921, %v1041
      %v1043 = vpop.f32.mrf.mxu0
      %1044 = vdwg.mxu0
      %1045 = vmatprep.subr.mxu0 0.0
      %1046 = vmatpush1.msra.mxu0 0.0
      %1047 = vmatprep.subr.mxu0 0.0
      %1048 = vmatpush1.msra.mxu0 0.0
      %1049 = vmatprep.subr.mxu0 0.0
      %1050 = vmatpush1.msra.mxu0 0.0
      %1051 = vmatprep.subr.mxu0 0.0
      %1052 = vmatpush1.msra.mxu0 0.0
      %1053 = vmatprep.subr.mxu0 0.0
      %1054 = vmatpush1.msra.mxu0 0.0
      %1055 = vmatprep.subr.mxu0 0.0
      %1056 = vmatpush1.msra.mxu0 0.0
      %1057 = vmatprep.subr.mxu0 0.0
      %1058 = vmatpush1.msra.mxu0 0.0
      %1059 = vmatprep.subr.mxu0 0.0
      %1060 = vmatpush1.msra.mxu0 0.0
      %1061 = vmatprep.subr.mxu0 0.0
      %1062 = vmatpush1.msra.mxu0 0.0
      %1063 = vmatprep.subr.mxu0 0.0
      %1064 = vmatpush1.msra.mxu0 0.0
      %1065 = vmatprep.subr.mxu0 0.0
      %1066 = vmatpush1.msra.mxu0 0.0
      %1067 = vmatprep.subr.mxu0 0.0
      %1068 = vmatpush1.msra.mxu0 0.0
      %1069 = vmatprep.subr.mxu0 0.0
      %v1070 = vand.u32 %v894, 4294901760
      %v1071 = vsub.f32 %v894, %v1070
      %v1072 = vand.u32 %v1071, 4294901760
      %v1073 = vsub.f32 %v1071, %v1072
      %v1074 = vand.u32 %v1073, 4294901760
      %1075 = vmatpush1.msra.mxu0 %v1074
      %1076 = vmatprep.subr.mxu0 0.0
      %v1077 = vand.u32 %v893, 4294901760
      %v1078 = vsub.f32 %v893, %v1077
      %v1079 = vand.u32 %v1078, 4294901760
      %v1080 = vsub.f32 %v1078, %v1079
      %v1081 = vand.u32 %v1080, 4294901760
      %1082 = vmatpush1.msra.mxu0 %v1081
      %1083 = vmatprep.subr.mxu0 0.0
      %v1084 = vand.u32 %v892, 4294901760
      %v1085 = vsub.f32 %v892, %v1084
      %v1086 = vand.u32 %v1085, 4294901760
      %v1087 = vsub.f32 %v1085, %v1086
      %v1088 = vand.u32 %v1087, 4294901760
      %1089 = vmatpush1.msra.mxu0 %v1088
      %1090 = vmatprep.subr.mxu0 0.0
      %v1091 = vand.u32 %v891, 4294901760
      %v1092 = vsub.f32 %v891, %v1091
      %v1093 = vand.u32 %v1092, 4294901760
      %v1094 = vsub.f32 %v1092, %v1093
      %v1095 = vand.u32 %v1094, 4294901760
      %1096 = vmatpush1.msra.mxu0 %v1095
      %1097 = vmatprep.subr.mxu0 0.0
      %1098 = vmatpush2.msra.mxu0 0.0
      %1099 = vmatprep.subr.mxu0 0.0
      %1100 = vmatpush2.msra.mxu0 0.0
      %1101 = vmatprep.subr.mxu0 0.0
      %1102 = vmatpush2.msra.mxu0 0.0
      %1103 = vmatprep.subr.mxu0 0.0
      %1104 = vmatpush2.msra.mxu0 0.0
      %1105 = vmatprep.subr.mxu0 0.0
      %1106 = vmatpush2.msra.mxu0 0.0
      %1107 = vmatprep.subr.mxu0 0.0
      %1108 = vmatpush2.msra.mxu0 0.0
      %1109 = vmatprep.subr.mxu0 0.0
      %1110 = vmatpush2.msra.mxu0 0.0
      %1111 = vmatprep.subr.mxu0 0.0
      %1112 = vmatpush2.msra.mxu0 0.0
      %1113 = vmatprep.subr.mxu0 0.0
      %1114 = vmatpush2.msra.mxu0 0.0
      %1115 = vmatprep.subr.mxu0 0.0
      %1116 = vmatpush2.msra.mxu0 0.0
      %1117 = vmatprep.subr.mxu0 0.0
      %1118 = vmatpush2.msra.mxu0 0.0
      %1119 = vmatprep.subr.mxu0 0.0
      %1120 = vmatpush2.msra.mxu0 0.0
      %1121 = vmatprep.subr.mxu0 0.0
      %1122 = vmatpush2.msra.mxu0 0.0
      %1123 = vmatprep.subr.mxu0 0.0
      %1124 = vmatpush2.msra.mxu0 0.0
      %1125 = vmatprep.subr.mxu0 0.0
      %1126 = vmatpush2.msra.mxu0 0.0
      %1127 = vmatprep.subr.mxu0 0.0
      %1128 = vmatpush2.msra.mxu0 0.0
      %1129 = vmatprep.mubr.f32.mxu0 0.0
      %v1130 = vand.u32 %v925, 4294901760
      %1131 = vmatmul.mubr.f32.gmra.mxu0 %v1130
      %v1132 = vpop.f32.mrf.mxu0
      %v1133 = vadd.f32 %v1012, %v1132
      %v1134 = vpop.f32.mrf.mxu0
      %1135 = vmatprep.mubr.f32.mxu0 0.0
      %v1136 = vand.u32 %v928, 4294901760
      %1137 = vmatmul.mubr.f32.gmra.mxu0 %v1136
      %v1138 = vpop.f32.mrf.mxu0
      %v1139 = vadd.f32 %v1022, %v1138
      %v1140 = vpop.f32.mrf.mxu0
      %1141 = vmatprep.mubr.f32.mxu0 0.0
      %v1142 = vand.u32 %v931, 4294901760
      %1143 = vmatmul.mubr.f32.gmra.mxu0 %v1142
      %v1144 = vpop.f32.mrf.mxu0
      %v1145 = vadd.f32 %v1032, %v1144
      %v1146 = vpop.f32.mrf.mxu0
      %1147 = vmatprep.mubr.f32.mxu0 0.0
      %v1148 = vand.u32 %v934, 4294901760
      %1149 = vmatmul.mubr.f32.gmra.mxu0 %v1148
      %v1150 = vpop.f32.mrf.mxu0
      %v1151 = vadd.f32 %v1042, %v1150
      %v1152 = vpop.f32.mrf.mxu0
      %1153 = vdwg.mxu0
      %1154 = vmatprep.subr.mxu0 0.0
      %1155 = vmatpush1.msra.mxu0 0.0
      %1156 = vmatprep.subr.mxu0 0.0
      %1157 = vmatpush1.msra.mxu0 0.0
      %1158 = vmatprep.subr.mxu0 0.0
      %1159 = vmatpush1.msra.mxu0 0.0
      %1160 = vmatprep.subr.mxu0 0.0
      %1161 = vmatpush1.msra.mxu0 0.0
      %1162 = vmatprep.subr.mxu0 0.0
      %1163 = vmatpush1.msra.mxu0 0.0
      %1164 = vmatprep.subr.mxu0 0.0
      %1165 = vmatpush1.msra.mxu0 0.0
      %1166 = vmatprep.subr.mxu0 0.0
      %1167 = vmatpush1.msra.mxu0 0.0
      %1168 = vmatprep.subr.mxu0 0.0
      %1169 = vmatpush1.msra.mxu0 0.0
      %1170 = vmatprep.subr.mxu0 0.0
      %1171 = vmatpush1.msra.mxu0 0.0
      %1172 = vmatprep.subr.mxu0 0.0
      %1173 = vmatpush1.msra.mxu0 0.0
      %1174 = vmatprep.subr.mxu0 0.0
      %1175 = vmatpush1.msra.mxu0 0.0
      %1176 = vmatprep.subr.mxu0 0.0
      %1177 = vmatpush1.msra.mxu0 0.0
      %1178 = vmatprep.subr.mxu0 0.0
      %v1179 = vand.u32 %v894, 4294901760
      %v1180 = vsub.f32 %v894, %v1179
      %1181 = vmatpush1.msra.mxu0 %v1180
      %1182 = vmatprep.subr.mxu0 0.0
      %v1183 = vand.u32 %v893, 4294901760
      %v1184 = vsub.f32 %v893, %v1183
      %1185 = vmatpush1.msra.mxu0 %v1184
      %1186 = vmatprep.subr.mxu0 0.0
      %v1187 = vand.u32 %v892, 4294901760
      %v1188 = vsub.f32 %v892, %v1187
      %1189 = vmatpush1.msra.mxu0 %v1188
      %1190 = vmatprep.subr.mxu0 0.0
      %v1191 = vand.u32 %v891, 4294901760
      %v1192 = vsub.f32 %v891, %v1191
      %1193 = vmatpush1.msra.mxu0 %v1192
      %1194 = vmatprep.subr.mxu0 0.0
      %1195 = vmatpush2.msra.mxu0 0.0
      %1196 = vmatprep.subr.mxu0 0.0
      %1197 = vmatpush2.msra.mxu0 0.0
      %1198 = vmatprep.subr.mxu0 0.0
      %1199 = vmatpush2.msra.mxu0 0.0
      %1200 = vmatprep.subr.mxu0 0.0
      %1201 = vmatpush2.msra.mxu0 0.0
      %1202 = vmatprep.subr.mxu0 0.0
      %1203 = vmatpush2.msra.mxu0 0.0
      %1204 = vmatprep.subr.mxu0 0.0
      %1205 = vmatpush2.msra.mxu0 0.0
      %1206 = vmatprep.subr.mxu0 0.0
      %1207 = vmatpush2.msra.mxu0 0.0
      %1208 = vmatprep.subr.mxu0 0.0
      %1209 = vmatpush2.msra.mxu0 0.0
      %1210 = vmatprep.subr.mxu0 0.0
      %1211 = vmatpush2.msra.mxu0 0.0
      %1212 = vmatprep.subr.mxu0 0.0
      %1213 = vmatpush2.msra.mxu0 0.0
      %1214 = vmatprep.subr.mxu0 0.0
      %1215 = vmatpush2.msra.mxu0 0.0
      %1216 = vmatprep.subr.mxu0 0.0
      %1217 = vmatpush2.msra.mxu0 0.0
      %1218 = vmatprep.subr.mxu0 0.0
      %1219 = vmatpush2.msra.mxu0 0.0
      %1220 = vmatprep.subr.mxu0 0.0
      %1221 = vmatpush2.msra.mxu0 0.0
      %1222 = vmatprep.subr.mxu0 0.0
      %1223 = vmatpush2.msra.mxu0 0.0
      %1224 = vmatprep.subr.mxu0 0.0
      %1225 = vmatpush2.msra.mxu0 0.0
      %1226 = vmatprep.mubr.f32.mxu0 0.0
      %v1227 = vand.u32 %v925, 4294901760
      %v1228 = vsub.f32 %v925, %v1227
      %1229 = vmatmul.mubr.f32.gmra.mxu0 %v1228
      %v1230 = vpop.f32.mrf.mxu0
      %v1231 = vadd.f32 %v1133, %v1230
      %v1232 = vpop.f32.mrf.mxu0
      %1233 = vmatprep.mubr.f32.mxu0 0.0
      %v1234 = vand.u32 %v928, 4294901760
      %v1235 = vsub.f32 %v928, %v1234
      %1236 = vmatmul.mubr.f32.gmra.mxu0 %v1235
      %v1237 = vpop.f32.mrf.mxu0
      %v1238 = vadd.f32 %v1139, %v1237
      %v1239 = vpop.f32.mrf.mxu0
      %1240 = vmatprep.mubr.f32.mxu0 0.0
      %v1241 = vand.u32 %v931, 4294901760
      %v1242 = vsub.f32 %v931, %v1241
      %1243 = vmatmul.mubr.f32.gmra.mxu0 %v1242
      %v1244 = vpop.f32.mrf.mxu0
      %v1245 = vadd.f32 %v1145, %v1244
      %v1246 = vpop.f32.mrf.mxu0
      %1247 = vmatprep.mubr.f32.mxu0 0.0
      %v1248 = vand.u32 %v934, 4294901760
      %v1249 = vsub.f32 %v934, %v1248
      %1250 = vmatmul.mubr.f32.gmra.mxu0 %v1249
      %v1251 = vpop.f32.mrf.mxu0
      %v1252 = vadd.f32 %v1151, %v1251
      %v1253 = vpop.f32.mrf.mxu0
      %1254 = vdwg.mxu0
      %1255 = vmatprep.subr.mxu0 0.0
      %1256 = vmatpush1.msra.mxu0 0.0
      %1257 = vmatprep.subr.mxu0 0.0
      %1258 = vmatpush1.msra.mxu0 0.0
      %1259 = vmatprep.subr.mxu0 0.0
      %1260 = vmatpush1.msra.mxu0 0.0
      %1261 = vmatprep.subr.mxu0 0.0
      %1262 = vmatpush1.msra.mxu0 0.0
      %1263 = vmatprep.subr.mxu0 0.0
      %1264 = vmatpush1.msra.mxu0 0.0
      %1265 = vmatprep.subr.mxu0 0.0
      %1266 = vmatpush1.msra.mxu0 0.0
      %1267 = vmatprep.subr.mxu0 0.0
      %1268 = vmatpush1.msra.mxu0 0.0
      %1269 = vmatprep.subr.mxu0 0.0
      %1270 = vmatpush1.msra.mxu0 0.0
      %1271 = vmatprep.subr.mxu0 0.0
      %1272 = vmatpush1.msra.mxu0 0.0
      %1273 = vmatprep.subr.mxu0 0.0
      %1274 = vmatpush1.msra.mxu0 0.0
      %1275 = vmatprep.subr.mxu0 0.0
      %1276 = vmatpush1.msra.mxu0 0.0
      %1277 = vmatprep.subr.mxu0 0.0
      %1278 = vmatpush1.msra.mxu0 0.0
      %1279 = vmatprep.subr.mxu0 0.0
      %v1280 = vand.u32 %v894, 4294901760
      %1281 = vmatpush1.msra.mxu0 %v1280
      %1282 = vmatprep.subr.mxu0 0.0
      %v1283 = vand.u32 %v893, 4294901760
      %1284 = vmatpush1.msra.mxu0 %v1283
      %1285 = vmatprep.subr.mxu0 0.0
      %v1286 = vand.u32 %v892, 4294901760
      %1287 = vmatpush1.msra.mxu0 %v1286
      %1288 = vmatprep.subr.mxu0 0.0
      %v1289 = vand.u32 %v891, 4294901760
      %1290 = vmatpush1.msra.mxu0 %v1289
      %1291 = vmatprep.subr.mxu0 0.0
      %1292 = vmatpush2.msra.mxu0 0.0
      %1293 = vmatprep.subr.mxu0 0.0
      %1294 = vmatpush2.msra.mxu0 0.0
      %1295 = vmatprep.subr.mxu0 0.0
      %1296 = vmatpush2.msra.mxu0 0.0
      %1297 = vmatprep.subr.mxu0 0.0
      %1298 = vmatpush2.msra.mxu0 0.0
      %1299 = vmatprep.subr.mxu0 0.0
      %1300 = vmatpush2.msra.mxu0 0.0
      %1301 = vmatprep.subr.mxu0 0.0
      %1302 = vmatpush2.msra.mxu0 0.0
      %1303 = vmatprep.subr.mxu0 0.0
      %1304 = vmatpush2.msra.mxu0 0.0
      %1305 = vmatprep.subr.mxu0 0.0
      %1306 = vmatpush2.msra.mxu0 0.0
      %1307 = vmatprep.subr.mxu0 0.0
      %1308 = vmatpush2.msra.mxu0 0.0
      %1309 = vmatprep.subr.mxu0 0.0
      %1310 = vmatpush2.msra.mxu0 0.0
      %1311 = vmatprep.subr.mxu0 0.0
      %1312 = vmatpush2.msra.mxu0 0.0
      %1313 = vmatprep.subr.mxu0 0.0
      %1314 = vmatpush2.msra.mxu0 0.0
      %1315 = vmatprep.subr.mxu0 0.0
      %1316 = vmatpush2.msra.mxu0 0.0
      %1317 = vmatprep.subr.mxu0 0.0
      %1318 = vmatpush2.msra.mxu0 0.0
      %1319 = vmatprep.subr.mxu0 0.0
      %1320 = vmatpush2.msra.mxu0 0.0
      %1321 = vmatprep.subr.mxu0 0.0
      %1322 = vmatpush2.msra.mxu0 0.0
      %1323 = vmatprep.mubr.f32.mxu0 0.0
      %v1324 = vand.u32 %v925, 4294901760
      %v1325 = vsub.f32 %v925, %v1324
      %v1326 = vand.u32 %v1325, 4294901760
      %1327 = vmatmul.mubr.f32.gmra.mxu0 %v1326
      %v1328 = vpop.f32.mrf.mxu0
      %v1329 = vadd.f32 %v1231, %v1328
      %v1330 = vpop.f32.mrf.mxu0
      %1331 = vmatprep.mubr.f32.mxu0 0.0
      %v1332 = vand.u32 %v928, 4294901760
      %v1333 = vsub.f32 %v928, %v1332
      %v1334 = vand.u32 %v1333, 4294901760
      %1335 = vmatmul.mubr.f32.gmra.mxu0 %v1334
      %v1336 = vpop.f32.mrf.mxu0
      %v1337 = vadd.f32 %v1238, %v1336
      %v1338 = vpop.f32.mrf.mxu0
      %1339 = vmatprep.mubr.f32.mxu0 0.0
      %v1340 = vand.u32 %v931, 4294901760
      %v1341 = vsub.f32 %v931, %v1340
      %v1342 = vand.u32 %v1341, 4294901760
      %1343 = vmatmul.mubr.f32.gmra.mxu0 %v1342
      %v1344 = vpop.f32.mrf.mxu0
      %v1345 = vadd.f32 %v1245, %v1344
      %v1346 = vpop.f32.mrf.mxu0
      %1347 = vmatprep.mubr.f32.mxu0 0.0
      %v1348 = vand.u32 %v934, 4294901760
      %v1349 = vsub.f32 %v934, %v1348
      %v1350 = vand.u32 %v1349, 4294901760
      %1351 = vmatmul.mubr.f32.gmra.mxu0 %v1350
      %v1352 = vpop.f32.mrf.mxu0
      %v1353 = vadd.f32 %v1252, %v1352
      %v1354 = vpop.f32.mrf.mxu0
      %1355 = vdwg.mxu0
      %1356 = vmatprep.subr.mxu0 0.0
      %1357 = vmatpush1.msra.mxu0 0.0
      %1358 = vmatprep.subr.mxu0 0.0
      %1359 = vmatpush1.msra.mxu0 0.0
      %1360 = vmatprep.subr.mxu0 0.0
      %1361 = vmatpush1.msra.mxu0 0.0
      %1362 = vmatprep.subr.mxu0 0.0
      %1363 = vmatpush1.msra.mxu0 0.0
      %1364 = vmatprep.subr.mxu0 0.0
      %1365 = vmatpush1.msra.mxu0 0.0
      %1366 = vmatprep.subr.mxu0 0.0
      %1367 = vmatpush1.msra.mxu0 0.0
      %1368 = vmatprep.subr.mxu0 0.0
      %1369 = vmatpush1.msra.mxu0 0.0
      %1370 = vmatprep.subr.mxu0 0.0
      %1371 = vmatpush1.msra.mxu0 0.0
      %1372 = vmatprep.subr.mxu0 0.0
      %1373 = vmatpush1.msra.mxu0 0.0
      %1374 = vmatprep.subr.mxu0 0.0
      %1375 = vmatpush1.msra.mxu0 0.0
      %1376 = vmatprep.subr.mxu0 0.0
      %1377 = vmatpush1.msra.mxu0 0.0
      %1378 = vmatprep.subr.mxu0 0.0
      %1379 = vmatpush1.msra.mxu0 0.0
      %1380 = vmatprep.subr.mxu0 0.0
      %v1381 = vand.u32 %v894, 4294901760
      %v1382 = vsub.f32 %v894, %v1381
      %v1383 = vand.u32 %v1382, 4294901760
      %1384 = vmatpush1.msra.mxu0 %v1383
      %1385 = vmatprep.subr.mxu0 0.0
      %v1386 = vand.u32 %v893, 4294901760
      %v1387 = vsub.f32 %v893, %v1386
      %v1388 = vand.u32 %v1387, 4294901760
      %1389 = vmatpush1.msra.mxu0 %v1388
      %1390 = vmatprep.subr.mxu0 0.0
      %v1391 = vand.u32 %v892, 4294901760
      %v1392 = vsub.f32 %v892, %v1391
      %v1393 = vand.u32 %v1392, 4294901760
      %1394 = vmatpush1.msra.mxu0 %v1393
      %1395 = vmatprep.subr.mxu0 0.0
      %v1396 = vand.u32 %v891, 4294901760
      %v1397 = vsub.f32 %v891, %v1396
      %v1398 = vand.u32 %v1397, 4294901760
      %1399 = vmatpush1.msra.mxu0 %v1398
      %1400 = vmatprep.subr.mxu0 0.0
      %1401 = vmatpush2.msra.mxu0 0.0
      %1402 = vmatprep.subr.mxu0 0.0
      %1403 = vmatpush2.msra.mxu0 0.0
      %1404 = vmatprep.subr.mxu0 0.0
      %1405 = vmatpush2.msra.mxu0 0.0
      %1406 = vmatprep.subr.mxu0 0.0
      %1407 = vmatpush2.msra.mxu0 0.0
      %1408 = vmatprep.subr.mxu0 0.0
      %1409 = vmatpush2.msra.mxu0 0.0
      %1410 = vmatprep.subr.mxu0 0.0
      %1411 = vmatpush2.msra.mxu0 0.0
      %1412 = vmatprep.subr.mxu0 0.0
      %1413 = vmatpush2.msra.mxu0 0.0
      %1414 = vmatprep.subr.mxu0 0.0
      %1415 = vmatpush2.msra.mxu0 0.0
      %1416 = vmatprep.subr.mxu0 0.0
      %1417 = vmatpush2.msra.mxu0 0.0
      %1418 = vmatprep.subr.mxu0 0.0
      %1419 = vmatpush2.msra.mxu0 0.0
      %1420 = vmatprep.subr.mxu0 0.0
      %1421 = vmatpush2.msra.mxu0 0.0
      %1422 = vmatprep.subr.mxu0 0.0
      %1423 = vmatpush2.msra.mxu0 0.0
      %1424 = vmatprep.subr.mxu0 0.0
      %1425 = vmatpush2.msra.mxu0 0.0
      %1426 = vmatprep.subr.mxu0 0.0
      %1427 = vmatpush2.msra.mxu0 0.0
      %1428 = vmatprep.subr.mxu0 0.0
      %1429 = vmatpush2.msra.mxu0 0.0
      %1430 = vmatprep.subr.mxu0 0.0
      %1431 = vmatpush2.msra.mxu0 0.0
      %1432 = vmatprep.mubr.f32.mxu0 0.0
      %v1433 = vand.u32 %v925, 4294901760
      %1434 = vmatmul.mubr.f32.gmra.mxu0 %v1433
      %v1435 = vpop.f32.mrf.mxu0
      %v1436 = vadd.f32 %v1329, %v1435
      %v1437 = vpop.f32.mrf.mxu0
      %1438 = vmatprep.mubr.f32.mxu0 0.0
      %v1439 = vand.u32 %v928, 4294901760
      %1440 = vmatmul.mubr.f32.gmra.mxu0 %v1439
      %v1441 = vpop.f32.mrf.mxu0
      %v1442 = vadd.f32 %v1337, %v1441
      %v1443 = vpop.f32.mrf.mxu0
      %1444 = vmatprep.mubr.f32.mxu0 0.0
      %v1445 = vand.u32 %v931, 4294901760
      %1446 = vmatmul.mubr.f32.gmra.mxu0 %v1445
      %v1447 = vpop.f32.mrf.mxu0
      %v1448 = vadd.f32 %v1345, %v1447
      %v1449 = vpop.f32.mrf.mxu0
      %1450 = vmatprep.mubr.f32.mxu0 0.0
      %v1451 = vand.u32 %v934, 4294901760
      %1452 = vmatmul.mubr.f32.gmra.mxu0 %v1451
      %v1453 = vpop.f32.mrf.mxu0
      %v1454 = vadd.f32 %v1353, %v1453
      %v1455 = vpop.f32.mrf.mxu0
      %1456 = vdwg.mxu0
      %1457 = vmatprep.subr.mxu0 0.0
      %1458 = vmatpush1.msra.mxu0 0.0
      %1459 = vmatprep.subr.mxu0 0.0
      %1460 = vmatpush1.msra.mxu0 0.0
      %1461 = vmatprep.subr.mxu0 0.0
      %1462 = vmatpush1.msra.mxu0 0.0
      %1463 = vmatprep.subr.mxu0 0.0
      %1464 = vmatpush1.msra.mxu0 0.0
      %1465 = vmatprep.subr.mxu0 0.0
      %1466 = vmatpush1.msra.mxu0 0.0
      %1467 = vmatprep.subr.mxu0 0.0
      %1468 = vmatpush1.msra.mxu0 0.0
      %1469 = vmatprep.subr.mxu0 0.0
      %1470 = vmatpush1.msra.mxu0 0.0
      %1471 = vmatprep.subr.mxu0 0.0
      %1472 = vmatpush1.msra.mxu0 0.0
      %1473 = vmatprep.subr.mxu0 0.0
      %1474 = vmatpush1.msra.mxu0 0.0
      %1475 = vmatprep.subr.mxu0 0.0
      %1476 = vmatpush1.msra.mxu0 0.0
      %1477 = vmatprep.subr.mxu0 0.0
      %1478 = vmatpush1.msra.mxu0 0.0
      %1479 = vmatprep.subr.mxu0 0.0
      %1480 = vmatpush1.msra.mxu0 0.0
      %1481 = vmatprep.subr.mxu0 0.0
      %v1482 = vand.u32 %v894, 4294901760
      %1483 = vmatpush1.msra.mxu0 %v1482
      %1484 = vmatprep.subr.mxu0 0.0
      %v1485 = vand.u32 %v893, 4294901760
      %1486 = vmatpush1.msra.mxu0 %v1485
      %1487 = vmatprep.subr.mxu0 0.0
      %v1488 = vand.u32 %v892, 4294901760
      %1489 = vmatpush1.msra.mxu0 %v1488
      %1490 = vmatprep.subr.mxu0 0.0
      %v1491 = vand.u32 %v891, 4294901760
      %1492 = vmatpush1.msra.mxu0 %v1491
      %1493 = vmatprep.subr.mxu0 0.0
      %1494 = vmatpush2.msra.mxu0 0.0
      %1495 = vmatprep.subr.mxu0 0.0
      %1496 = vmatpush2.msra.mxu0 0.0
      %1497 = vmatprep.subr.mxu0 0.0
      %1498 = vmatpush2.msra.mxu0 0.0
      %1499 = vmatprep.subr.mxu0 0.0
      %1500 = vmatpush2.msra.mxu0 0.0
      %1501 = vmatprep.subr.mxu0 0.0
      %1502 = vmatpush2.msra.mxu0 0.0
      %1503 = vmatprep.subr.mxu0 0.0
      %1504 = vmatpush2.msra.mxu0 0.0
      %1505 = vmatprep.subr.mxu0 0.0
      %1506 = vmatpush2.msra.mxu0 0.0
      %1507 = vmatprep.subr.mxu0 0.0
      %1508 = vmatpush2.msra.mxu0 0.0
      %1509 = vmatprep.subr.mxu0 0.0
      %1510 = vmatpush2.msra.mxu0 0.0
      %1511 = vmatprep.subr.mxu0 0.0
      %1512 = vmatpush2.msra.mxu0 0.0
      %1513 = vmatprep.subr.mxu0 0.0
      %1514 = vmatpush2.msra.mxu0 0.0
      %1515 = vmatprep.subr.mxu0 0.0
      %1516 = vmatpush2.msra.mxu0 0.0
      %1517 = vmatprep.subr.mxu0 0.0
      %1518 = vmatpush2.msra.mxu0 0.0
      %1519 = vmatprep.subr.mxu0 0.0
      %1520 = vmatpush2.msra.mxu0 0.0
      %1521 = vmatprep.subr.mxu0 0.0
      %1522 = vmatpush2.msra.mxu0 0.0
      %1523 = vmatprep.subr.mxu0 0.0
      %1524 = vmatpush2.msra.mxu0 0.0
      %1525 = vmatprep.mubr.f32.mxu0 0.0
      %v1526 = vand.u32 %v925, 4294901760
      %1527 = vmatmul.mubr.f32.gmra.mxu0 %v1526
      %v1528 = vpop.f32.mrf.mxu0
      %v1529 = vadd.f32 %v1436, %v1528
      %v1530 = vpop.f32.mrf.mxu0
      %1531 = vmatprep.mubr.f32.mxu0 0.0
      %v1532 = vand.u32 %v928, 4294901760
      %1533 = vmatmul.mubr.f32.gmra.mxu0 %v1532
      %v1534 = vpop.f32.mrf.mxu0
      %v1535 = vadd.f32 %v1442, %v1534
      %v1536 = vpop.f32.mrf.mxu0
      %1537 = vmatprep.mubr.f32.mxu0 0.0
      %v1538 = vand.u32 %v931, 4294901760
      %1539 = vmatmul.mubr.f32.gmra.mxu0 %v1538
      %v1540 = vpop.f32.mrf.mxu0
      %v1541 = vadd.f32 %v1448, %v1540
      %v1542 = vpop.f32.mrf.mxu0
      %1543 = vmatprep.mubr.f32.mxu0 0.0
      %v1544 = vand.u32 %v934, 4294901760
      %1545 = vmatmul.mubr.f32.gmra.mxu0 %v1544
      %v1546 = vpop.f32.mrf.mxu0
      %v1547 = vadd.f32 %v1454, %v1546
      %v1548 = vpop.f32.mrf.mxu0
      %1549 = vdwg.mxu0
      %v1550 = vtanh.pop %v1529
      %v1551 = vtanh.pop %v1535
      %v1552 = vtanh.pop %v1541
      %v1553 = vtanh.pop %v1547
      %v1554 = vld [vmem:[%s5] sm:$0xff]
      %v1555 = vld [vmem:[%s6] sm:$0xff]
      %1557 = vset.pattern.permute.xlu0 0
      %1558 = vperm.xlu0 %1557, %v1555
      %v1559 = vpop.permute.xlu0 %1558
      %v1562 = vsel %vm923, %v1554, 0
      %1564 = vmatprep.subr.mxu0 0.0
      %1565 = vmatpush1.msra.mxu0 0.0
      %1566 = vmatprep.subr.mxu0 0.0
      %1567 = vmatpush1.msra.mxu0 0.0
      %1568 = vmatprep.subr.mxu0 0.0
      %1569 = vmatpush1.msra.mxu0 0.0
      %1570 = vmatprep.subr.mxu0 0.0
      %1571 = vmatpush1.msra.mxu0 0.0
      %1572 = vmatprep.subr.mxu0 0.0
      %1573 = vmatpush1.msra.mxu0 0.0
      %1574 = vmatprep.subr.mxu0 0.0
      %1575 = vmatpush1.msra.mxu0 0.0
      %1576 = vmatprep.subr.mxu0 0.0
      %1577 = vmatpush1.msra.mxu0 0.0
      %1578 = vmatprep.subr.mxu0 0.0
      %1579 = vmatpush1.msra.mxu0 0.0
      %1580 = vmatprep.subr.mxu0 0.0
      %1581 = vmatpush1.msra.mxu0 0.0
      %1582 = vmatprep.subr.mxu0 0.0
      %1583 = vmatpush1.msra.mxu0 0.0
      %1584 = vmatprep.subr.mxu0 0.0
      %1585 = vmatpush1.msra.mxu0 0.0
      %1586 = vmatprep.subr.mxu0 0.0
      %1587 = vmatpush1.msra.mxu0 0.0
      %1588 = vmatprep.subr.mxu0 0.0
      %v1589 = vand.u32 %v1553, 4294901760
      %1590 = vmatpush1.msra.mxu0 %v1589
      %1591 = vmatprep.subr.mxu0 0.0
      %v1592 = vand.u32 %v1552, 4294901760
      %1593 = vmatpush1.msra.mxu0 %v1592
      %1594 = vmatprep.subr.mxu0 0.0
      %v1595 = vand.u32 %v1551, 4294901760
      %1596 = vmatpush1.msra.mxu0 %v1595
      %1597 = vmatprep.subr.mxu0 0.0
      %v1598 = vand.u32 %v1550, 4294901760
      %1599 = vmatpush1.msra.mxu0 %v1598
      %1600 = vmatprep.subr.mxu0 0.0
      %1601 = vmatpush2.msra.mxu0 0.0
      %1602 = vmatprep.subr.mxu0 0.0
      %1603 = vmatpush2.msra.mxu0 0.0
      %1604 = vmatprep.subr.mxu0 0.0
      %1605 = vmatpush2.msra.mxu0 0.0
      %1606 = vmatprep.subr.mxu0 0.0
      %1607 = vmatpush2.msra.mxu0 0.0
      %1608 = vmatprep.subr.mxu0 0.0
      %1609 = vmatpush2.msra.mxu0 0.0
      %1610 = vmatprep.subr.mxu0 0.0
      %1611 = vmatpush2.msra.mxu0 0.0
      %1612 = vmatprep.subr.mxu0 0.0
      %1613 = vmatpush2.msra.mxu0 0.0
      %1614 = vmatprep.subr.mxu0 0.0
      %1615 = vmatpush2.msra.mxu0 0.0
      %1616 = vmatprep.subr.mxu0 0.0
      %1617 = vmatpush2.msra.mxu0 0.0
      %1618 = vmatprep.subr.mxu0 0.0
      %1619 = vmatpush2.msra.mxu0 0.0
      %1620 = vmatprep.subr.mxu0 0.0
      %1621 = vmatpush2.msra.mxu0 0.0
      %1622 = vmatprep.subr.mxu0 0.0
      %1623 = vmatpush2.msra.mxu0 0.0
      %1624 = vmatprep.subr.mxu0 0.0
      %1625 = vmatpush2.msra.mxu0 0.0
      %1626 = vmatprep.subr.mxu0 0.0
      %1627 = vmatpush2.msra.mxu0 0.0
      %1628 = vmatprep.subr.mxu0 0.0
      %1629 = vmatpush2.msra.mxu0 0.0
      %1630 = vmatprep.subr.mxu0 0.0
      %1631 = vmatpush2.msra.mxu0 0.0
      %1632 = vmatprep.mubr.f32.mxu0 0.0
      %v1633 = vand.u32 %v1562, 4294901760
      %v1634 = vsub.f32 %v1562, %v1633
      %v1635 = vand.u32 %v1634, 4294901760
      %v1636 = vsub.f32 %v1634, %v1635
      %v1637 = vand.u32 %v1636, 4294901760
      %1638 = vmatmul.mubr.f32.gmra.mxu0 %v1637
      %v1639 = vpop.f32.mrf.mxu0
      %v1640 = vadd.f32 %v1559, %v1639
      %v1641 = vpop.f32.mrf.mxu0
      %1642 = vdwg.mxu0
      %1643 = vmatprep.subr.mxu0 0.0
      %1644 = vmatpush1.msra.mxu0 0.0
      %1645 = vmatprep.subr.mxu0 0.0
      %1646 = vmatpush1.msra.mxu0 0.0
      %1647 = vmatprep.subr.mxu0 0.0
      %1648 = vmatpush1.msra.mxu0 0.0
      %1649 = vmatprep.subr.mxu0 0.0
      %1650 = vmatpush1.msra.mxu0 0.0
      %1651 = vmatprep.subr.mxu0 0.0
      %1652 = vmatpush1.msra.mxu0 0.0
      %1653 = vmatprep.subr.mxu0 0.0
      %1654 = vmatpush1.msra.mxu0 0.0
      %1655 = vmatprep.subr.mxu0 0.0
      %1656 = vmatpush1.msra.mxu0 0.0
      %1657 = vmatprep.subr.mxu0 0.0
      %1658 = vmatpush1.msra.mxu0 0.0
      %1659 = vmatprep.subr.mxu0 0.0
      %1660 = vmatpush1.msra.mxu0 0.0
      %1661 = vmatprep.subr.mxu0 0.0
      %1662 = vmatpush1.msra.mxu0 0.0
      %1663 = vmatprep.subr.mxu0 0.0
      %1664 = vmatpush1.msra.mxu0 0.0
      %1665 = vmatprep.subr.mxu0 0.0
      %1666 = vmatpush1.msra.mxu0 0.0
      %1667 = vmatprep.subr.mxu0 0.0
      %v1668 = vand.u32 %v1553, 4294901760
      %v1669 = vsub.f32 %v1553, %v1668
      %v1670 = vand.u32 %v1669, 4294901760
      %v1671 = vsub.f32 %v1669, %v1670
      %v1672 = vand.u32 %v1671, 4294901760
      %1673 = vmatpush1.msra.mxu0 %v1672
      %1674 = vmatprep.subr.mxu0 0.0
      %v1675 = vand.u32 %v1552, 4294901760
      %v1676 = vsub.f32 %v1552, %v1675
      %v1677 = vand.u32 %v1676, 4294901760
      %v1678 = vsub.f32 %v1676, %v1677
      %v1679 = vand.u32 %v1678, 4294901760
      %1680 = vmatpush1.msra.mxu0 %v1679
      %1681 = vmatprep.subr.mxu0 0.0
      %v1682 = vand.u32 %v1551, 4294901760
      %v1683 = vsub.f32 %v1551, %v1682
      %v1684 = vand.u32 %v1683, 4294901760
      %v1685 = vsub.f32 %v1683, %v1684
      %v1686 = vand.u32 %v1685, 4294901760
      %1687 = vmatpush1.msra.mxu0 %v1686
      %1688 = vmatprep.subr.mxu0 0.0
      %v1689 = vand.u32 %v1550, 4294901760
      %v1690 = vsub.f32 %v1550, %v1689
      %v1691 = vand.u32 %v1690, 4294901760
      %v1692 = vsub.f32 %v1690, %v1691
      %v1693 = vand.u32 %v1692, 4294901760
      %1694 = vmatpush1.msra.mxu0 %v1693
      %1695 = vmatprep.subr.mxu0 0.0
      %1696 = vmatpush2.msra.mxu0 0.0
      %1697 = vmatprep.subr.mxu0 0.0
      %1698 = vmatpush2.msra.mxu0 0.0
      %1699 = vmatprep.subr.mxu0 0.0
      %1700 = vmatpush2.msra.mxu0 0.0
      %1701 = vmatprep.subr.mxu0 0.0
      %1702 = vmatpush2.msra.mxu0 0.0
      %1703 = vmatprep.subr.mxu0 0.0
      %1704 = vmatpush2.msra.mxu0 0.0
      %1705 = vmatprep.subr.mxu0 0.0
      %1706 = vmatpush2.msra.mxu0 0.0
      %1707 = vmatprep.subr.mxu0 0.0
      %1708 = vmatpush2.msra.mxu0 0.0
      %1709 = vmatprep.subr.mxu0 0.0
      %1710 = vmatpush2.msra.mxu0 0.0
      %1711 = vmatprep.subr.mxu0 0.0
      %1712 = vmatpush2.msra.mxu0 0.0
      %1713 = vmatprep.subr.mxu0 0.0
      %1714 = vmatpush2.msra.mxu0 0.0
      %1715 = vmatprep.subr.mxu0 0.0
      %1716 = vmatpush2.msra.mxu0 0.0
      %1717 = vmatprep.subr.mxu0 0.0
      %1718 = vmatpush2.msra.mxu0 0.0
      %1719 = vmatprep.subr.mxu0 0.0
      %1720 = vmatpush2.msra.mxu0 0.0
      %1721 = vmatprep.subr.mxu0 0.0
      %1722 = vmatpush2.msra.mxu0 0.0
      %1723 = vmatprep.subr.mxu0 0.0
      %1724 = vmatpush2.msra.mxu0 0.0
      %1725 = vmatprep.subr.mxu0 0.0
      %1726 = vmatpush2.msra.mxu0 0.0
      %1727 = vmatprep.mubr.f32.mxu0 0.0
      %v1728 = vand.u32 %v1562, 4294901760
      %1729 = vmatmul.mubr.f32.gmra.mxu0 %v1728
      %v1730 = vpop.f32.mrf.mxu0
      %v1731 = vadd.f32 %v1640, %v1730
      %v1732 = vpop.f32.mrf.mxu0
      %1733 = vdwg.mxu0
      %1734 = vmatprep.subr.mxu0 0.0
      %1735 = vmatpush1.msra.mxu0 0.0
      %1736 = vmatprep.subr.mxu0 0.0
      %1737 = vmatpush1.msra.mxu0 0.0
      %1738 = vmatprep.subr.mxu0 0.0
      %1739 = vmatpush1.msra.mxu0 0.0
      %1740 = vmatprep.subr.mxu0 0.0
      %1741 = vmatpush1.msra.mxu0 0.0
      %1742 = vmatprep.subr.mxu0 0.0
      %1743 = vmatpush1.msra.mxu0 0.0
      %1744 = vmatprep.subr.mxu0 0.0
      %1745 = vmatpush1.msra.mxu0 0.0
      %1746 = vmatprep.subr.mxu0 0.0
      %1747 = vmatpush1.msra.mxu0 0.0
      %1748 = vmatprep.subr.mxu0 0.0
      %1749 = vmatpush1.msra.mxu0 0.0
      %1750 = vmatprep.subr.mxu0 0.0
      %1751 = vmatpush1.msra.mxu0 0.0
      %1752 = vmatprep.subr.mxu0 0.0
      %1753 = vmatpush1.msra.mxu0 0.0
      %1754 = vmatprep.subr.mxu0 0.0
      %1755 = vmatpush1.msra.mxu0 0.0
      %1756 = vmatprep.subr.mxu0 0.0
      %1757 = vmatpush1.msra.mxu0 0.0
      %1758 = vmatprep.subr.mxu0 0.0
      %v1759 = vand.u32 %v1553, 4294901760
      %v1760 = vsub.f32 %v1553, %v1759
      %1761 = vmatpush1.msra.mxu0 %v1760
      %1762 = vmatprep.subr.mxu0 0.0
      %v1763 = vand.u32 %v1552, 4294901760
      %v1764 = vsub.f32 %v1552, %v1763
      %1765 = vmatpush1.msra.mxu0 %v1764
      %1766 = vmatprep.subr.mxu0 0.0
      %v1767 = vand.u32 %v1551, 4294901760
      %v1768 = vsub.f32 %v1551, %v1767
      %1769 = vmatpush1.msra.mxu0 %v1768
      %1770 = vmatprep.subr.mxu0 0.0
      %v1771 = vand.u32 %v1550, 4294901760
      %v1772 = vsub.f32 %v1550, %v1771
      %1773 = vmatpush1.msra.mxu0 %v1772
      %1774 = vmatprep.subr.mxu0 0.0
      %1775 = vmatpush2.msra.mxu0 0.0
      %1776 = vmatprep.subr.mxu0 0.0
      %1777 = vmatpush2.msra.mxu0 0.0
      %1778 = vmatprep.subr.mxu0 0.0
      %1779 = vmatpush2.msra.mxu0 0.0
      %1780 = vmatprep.subr.mxu0 0.0
      %1781 = vmatpush2.msra.mxu0 0.0
      %1782 = vmatprep.subr.mxu0 0.0
      %1783 = vmatpush2.msra.mxu0 0.0
      %1784 = vmatprep.subr.mxu0 0.0
      %1785 = vmatpush2.msra.mxu0 0.0
      %1786 = vmatprep.subr.mxu0 0.0
      %1787 = vmatpush2.msra.mxu0 0.0
      %1788 = vmatprep.subr.mxu0 0.0
      %1789 = vmatpush2.msra.mxu0 0.0
      %1790 = vmatprep.subr.mxu0 0.0
      %1791 = vmatpush2.msra.mxu0 0.0
      %1792 = vmatprep.subr.mxu0 0.0
      %1793 = vmatpush2.msra.mxu0 0.0
      %1794 = vmatprep.subr.mxu0 0.0
      %1795 = vmatpush2.msra.mxu0 0.0
      %1796 = vmatprep.subr.mxu0 0.0
      %1797 = vmatpush2.msra.mxu0 0.0
      %1798 = vmatprep.subr.mxu0 0.0
      %1799 = vmatpush2.msra.mxu0 0.0
      %1800 = vmatprep.subr.mxu0 0.0
      %1801 = vmatpush2.msra.mxu0 0.0
      %1802 = vmatprep.subr.mxu0 0.0
      %1803 = vmatpush2.msra.mxu0 0.0
      %1804 = vmatprep.subr.mxu0 0.0
      %1805 = vmatpush2.msra.mxu0 0.0
      %1806 = vmatprep.mubr.f32.mxu0 0.0
      %v1807 = vand.u32 %v1562, 4294901760
      %v1808 = vsub.f32 %v1562, %v1807
      %1809 = vmatmul.mubr.f32.gmra.mxu0 %v1808
      %v1810 = vpop.f32.mrf.mxu0
      %v1811 = vadd.f32 %v1731, %v1810
      %v1812 = vpop.f32.mrf.mxu0
      %1813 = vdwg.mxu0
      %1814 = vmatprep.subr.mxu0 0.0
      %1815 = vmatpush1.msra.mxu0 0.0
      %1816 = vmatprep.subr.mxu0 0.0
      %1817 = vmatpush1.msra.mxu0 0.0
      %1818 = vmatprep.subr.mxu0 0.0
      %1819 = vmatpush1.msra.mxu0 0.0
      %1820 = vmatprep.subr.mxu0 0.0
      %1821 = vmatpush1.msra.mxu0 0.0
      %1822 = vmatprep.subr.mxu0 0.0
      %1823 = vmatpush1.msra.mxu0 0.0
      %1824 = vmatprep.subr.mxu0 0.0
      %1825 = vmatpush1.msra.mxu0 0.0
      %1826 = vmatprep.subr.mxu0 0.0
      %1827 = vmatpush1.msra.mxu0 0.0
      %1828 = vmatprep.subr.mxu0 0.0
      %1829 = vmatpush1.msra.mxu0 0.0
      %1830 = vmatprep.subr.mxu0 0.0
      %1831 = vmatpush1.msra.mxu0 0.0
      %1832 = vmatprep.subr.mxu0 0.0
      %1833 = vmatpush1.msra.mxu0 0.0
      %1834 = vmatprep.subr.mxu0 0.0
      %1835 = vmatpush1.msra.mxu0 0.0
      %1836 = vmatprep.subr.mxu0 0.0
      %1837 = vmatpush1.msra.mxu0 0.0
      %1838 = vmatprep.subr.mxu0 0.0
      %v1839 = vand.u32 %v1553, 4294901760
      %1840 = vmatpush1.msra.mxu0 %v1839
      %1841 = vmatprep.subr.mxu0 0.0
      %v1842 = vand.u32 %v1552, 4294901760
      %1843 = vmatpush1.msra.mxu0 %v1842
      %1844 = vmatprep.subr.mxu0 0.0
      %v1845 = vand.u32 %v1551, 4294901760
      %1846 = vmatpush1.msra.mxu0 %v1845
      %1847 = vmatprep.subr.mxu0 0.0
      %v1848 = vand.u32 %v1550, 4294901760
      %1849 = vmatpush1.msra.mxu0 %v1848
      %1850 = vmatprep.subr.mxu0 0.0
      %1851 = vmatpush2.msra.mxu0 0.0
      %1852 = vmatprep.subr.mxu0 0.0
      %1853 = vmatpush2.msra.mxu0 0.0
      %1854 = vmatprep.subr.mxu0 0.0
      %1855 = vmatpush2.msra.mxu0 0.0
      %1856 = vmatprep.subr.mxu0 0.0
      %1857 = vmatpush2.msra.mxu0 0.0
      %1858 = vmatprep.subr.mxu0 0.0
      %1859 = vmatpush2.msra.mxu0 0.0
      %1860 = vmatprep.subr.mxu0 0.0
      %1861 = vmatpush2.msra.mxu0 0.0
      %1862 = vmatprep.subr.mxu0 0.0
      %1863 = vmatpush2.msra.mxu0 0.0
      %1864 = vmatprep.subr.mxu0 0.0
      %1865 = vmatpush2.msra.mxu0 0.0
      %1866 = vmatprep.subr.mxu0 0.0
      %1867 = vmatpush2.msra.mxu0 0.0
      %1868 = vmatprep.subr.mxu0 0.0
      %1869 = vmatpush2.msra.mxu0 0.0
      %1870 = vmatprep.subr.mxu0 0.0
      %1871 = vmatpush2.msra.mxu0 0.0
      %1872 = vmatprep.subr.mxu0 0.0
      %1873 = vmatpush2.msra.mxu0 0.0
      %1874 = vmatprep.subr.mxu0 0.0
      %1875 = vmatpush2.msra.mxu0 0.0
      %1876 = vmatprep.subr.mxu0 0.0
      %1877 = vmatpush2.msra.mxu0 0.0
      %1878 = vmatprep.subr.mxu0 0.0
      %1879 = vmatpush2.msra.mxu0 0.0
      %1880 = vmatprep.subr.mxu0 0.0
      %1881 = vmatpush2.msra.mxu0 0.0
      %1882 = vmatprep.mubr.f32.mxu0 0.0
      %v1883 = vand.u32 %v1562, 4294901760
      %v1884 = vsub.f32 %v1562, %v1883
      %v1885 = vand.u32 %v1884, 4294901760
      %1886 = vmatmul.mubr.f32.gmra.mxu0 %v1885
      %v1887 = vpop.f32.mrf.mxu0
      %v1888 = vadd.f32 %v1811, %v1887
      %v1889 = vpop.f32.mrf.mxu0
      %1890 = vdwg.mxu0
      %1891 = vmatprep.subr.mxu0 0.0
      %1892 = vmatpush1.msra.mxu0 0.0
      %1893 = vmatprep.subr.mxu0 0.0
      %1894 = vmatpush1.msra.mxu0 0.0
      %1895 = vmatprep.subr.mxu0 0.0
      %1896 = vmatpush1.msra.mxu0 0.0
      %1897 = vmatprep.subr.mxu0 0.0
      %1898 = vmatpush1.msra.mxu0 0.0
      %1899 = vmatprep.subr.mxu0 0.0
      %1900 = vmatpush1.msra.mxu0 0.0
      %1901 = vmatprep.subr.mxu0 0.0
      %1902 = vmatpush1.msra.mxu0 0.0
      %1903 = vmatprep.subr.mxu0 0.0
      %1904 = vmatpush1.msra.mxu0 0.0
      %1905 = vmatprep.subr.mxu0 0.0
      %1906 = vmatpush1.msra.mxu0 0.0
      %1907 = vmatprep.subr.mxu0 0.0
      %1908 = vmatpush1.msra.mxu0 0.0
      %1909 = vmatprep.subr.mxu0 0.0
      %1910 = vmatpush1.msra.mxu0 0.0
      %1911 = vmatprep.subr.mxu0 0.0
      %1912 = vmatpush1.msra.mxu0 0.0
      %1913 = vmatprep.subr.mxu0 0.0
      %1914 = vmatpush1.msra.mxu0 0.0
      %1915 = vmatprep.subr.mxu0 0.0
      %v1916 = vand.u32 %v1553, 4294901760
      %v1917 = vsub.f32 %v1553, %v1916
      %v1918 = vand.u32 %v1917, 4294901760
      %1919 = vmatpush1.msra.mxu0 %v1918
      %1920 = vmatprep.subr.mxu0 0.0
      %v1921 = vand.u32 %v1552, 4294901760
      %v1922 = vsub.f32 %v1552, %v1921
      %v1923 = vand.u32 %v1922, 4294901760
      %1924 = vmatpush1.msra.mxu0 %v1923
      %1925 = vmatprep.subr.mxu0 0.0
      %v1926 = vand.u32 %v1551, 4294901760
      %v1927 = vsub.f32 %v1551, %v1926
      %v1928 = vand.u32 %v1927, 4294901760
      %1929 = vmatpush1.msra.mxu0 %v1928
      %1930 = vmatprep.subr.mxu0 0.0
      %v1931 = vand.u32 %v1550, 4294901760
      %v1932 = vsub.f32 %v1550, %v1931
      %v1933 = vand.u32 %v1932, 4294901760
      %1934 = vmatpush1.msra.mxu0 %v1933
      %1935 = vmatprep.subr.mxu0 0.0
      %1936 = vmatpush2.msra.mxu0 0.0
      %1937 = vmatprep.subr.mxu0 0.0
      %1938 = vmatpush2.msra.mxu0 0.0
      %1939 = vmatprep.subr.mxu0 0.0
      %1940 = vmatpush2.msra.mxu0 0.0
      %1941 = vmatprep.subr.mxu0 0.0
      %1942 = vmatpush2.msra.mxu0 0.0
      %1943 = vmatprep.subr.mxu0 0.0
      %1944 = vmatpush2.msra.mxu0 0.0
      %1945 = vmatprep.subr.mxu0 0.0
      %1946 = vmatpush2.msra.mxu0 0.0
      %1947 = vmatprep.subr.mxu0 0.0
      %1948 = vmatpush2.msra.mxu0 0.0
      %1949 = vmatprep.subr.mxu0 0.0
      %1950 = vmatpush2.msra.mxu0 0.0
      %1951 = vmatprep.subr.mxu0 0.0
      %1952 = vmatpush2.msra.mxu0 0.0
      %1953 = vmatprep.subr.mxu0 0.0
      %1954 = vmatpush2.msra.mxu0 0.0
      %1955 = vmatprep.subr.mxu0 0.0
      %1956 = vmatpush2.msra.mxu0 0.0
      %1957 = vmatprep.subr.mxu0 0.0
      %1958 = vmatpush2.msra.mxu0 0.0
      %1959 = vmatprep.subr.mxu0 0.0
      %1960 = vmatpush2.msra.mxu0 0.0
      %1961 = vmatprep.subr.mxu0 0.0
      %1962 = vmatpush2.msra.mxu0 0.0
      %1963 = vmatprep.subr.mxu0 0.0
      %1964 = vmatpush2.msra.mxu0 0.0
      %1965 = vmatprep.subr.mxu0 0.0
      %1966 = vmatpush2.msra.mxu0 0.0
      %1967 = vmatprep.mubr.f32.mxu0 0.0
      %v1968 = vand.u32 %v1562, 4294901760
      %1969 = vmatmul.mubr.f32.gmra.mxu0 %v1968
      %v1970 = vpop.f32.mrf.mxu0
      %v1971 = vadd.f32 %v1888, %v1970
      %v1972 = vpop.f32.mrf.mxu0
      %1973 = vdwg.mxu0
      %1974 = vmatprep.subr.mxu0 0.0
      %1975 = vmatpush1.msra.mxu0 0.0
      %1976 = vmatprep.subr.mxu0 0.0
      %1977 = vmatpush1.msra.mxu0 0.0
      %1978 = vmatprep.subr.mxu0 0.0
      %1979 = vmatpush1.msra.mxu0 0.0
      %1980 = vmatprep.subr.mxu0 0.0
      %1981 = vmatpush1.msra.mxu0 0.0
      %1982 = vmatprep.subr.mxu0 0.0
      %1983 = vmatpush1.msra.mxu0 0.0
      %1984 = vmatprep.subr.mxu0 0.0
      %1985 = vmatpush1.msra.mxu0 0.0
      %1986 = vmatprep.subr.mxu0 0.0
      %1987 = vmatpush1.msra.mxu0 0.0
      %1988 = vmatprep.subr.mxu0 0.0
      %1989 = vmatpush1.msra.mxu0 0.0
      %1990 = vmatprep.subr.mxu0 0.0
      %1991 = vmatpush1.msra.mxu0 0.0
      %1992 = vmatprep.subr.mxu0 0.0
      %1993 = vmatpush1.msra.mxu0 0.0
      %1994 = vmatprep.subr.mxu0 0.0
      %1995 = vmatpush1.msra.mxu0 0.0
      %1996 = vmatprep.subr.mxu0 0.0
      %1997 = vmatpush1.msra.mxu0 0.0
      %1998 = vmatprep.subr.mxu0 0.0
      %v1999 = vand.u32 %v1553, 4294901760
      %2000 = vmatpush1.msra.mxu0 %v1999
      %2001 = vmatprep.subr.mxu0 0.0
      %v2002 = vand.u32 %v1552, 4294901760
      %2003 = vmatpush1.msra.mxu0 %v2002
      %2004 = vmatprep.subr.mxu0 0.0
      %v2005 = vand.u32 %v1551, 4294901760
      %2006 = vmatpush1.msra.mxu0 %v2005
      %2007 = vmatprep.subr.mxu0 0.0
      %v2008 = vand.u32 %v1550, 4294901760
      %2009 = vmatpush1.msra.mxu0 %v2008
      %2010 = vmatprep.subr.mxu0 0.0
      %2011 = vmatpush2.msra.mxu0 0.0
      %2012 = vmatprep.subr.mxu0 0.0
      %2013 = vmatpush2.msra.mxu0 0.0
      %2014 = vmatprep.subr.mxu0 0.0
      %2015 = vmatpush2.msra.mxu0 0.0
      %2016 = vmatprep.subr.mxu0 0.0
      %2017 = vmatpush2.msra.mxu0 0.0
      %2018 = vmatprep.subr.mxu0 0.0
      %2019 = vmatpush2.msra.mxu0 0.0
      %2020 = vmatprep.subr.mxu0 0.0
      %2021 = vmatpush2.msra.mxu0 0.0
      %2022 = vmatprep.subr.mxu0 0.0
      %2023 = vmatpush2.msra.mxu0 0.0
      %2024 = vmatprep.subr.mxu0 0.0
      %2025 = vmatpush2.msra.mxu0 0.0
      %2026 = vmatprep.subr.mxu0 0.0
      %2027 = vmatpush2.msra.mxu0 0.0
      %2028 = vmatprep.subr.mxu0 0.0
      %2029 = vmatpush2.msra.mxu0 0.0
      %2030 = vmatprep.subr.mxu0 0.0
      %2031 = vmatpush2.msra.mxu0 0.0
      %2032 = vmatprep.subr.mxu0 0.0
      %2033 = vmatpush2.msra.mxu0 0.0
      %2034 = vmatprep.subr.mxu0 0.0
      %2035 = vmatpush2.msra.mxu0 0.0
      %2036 = vmatprep.subr.mxu0 0.0
      %2037 = vmatpush2.msra.mxu0 0.0
      %2038 = vmatprep.subr.mxu0 0.0
      %2039 = vmatpush2.msra.mxu0 0.0
      %2040 = vmatprep.subr.mxu0 0.0
      %2041 = vmatpush2.msra.mxu0 0.0
      %2042 = vmatprep.mubr.f32.mxu0 0.0
      %v2043 = vand.u32 %v1562, 4294901760
      %2044 = vmatmul.mubr.f32.gmra.mxu0 %v2043
      %v2045 = vpop.f32.mrf.mxu0
      %v2046 = vadd.f32 %v1971, %v2045
      %v2047 = vpop.f32.mrf.mxu0
      %2048 = vdwg.mxu0
      %2049 = vst [vmem:[%s273] sm:$0xff] %v2046
      %p2050 = scmp.lt.s32.totalorder %s18, 1
      %s2051 = scalar_select %p2050, %s18, 1
      %s2052 = smul.addr %s2051, 8
      %s2053 = scalar_lea.vmem %s7, %s2052
      // Predicated region
      $region49: #{_dqn_forward_pallas.1} parent=47 // pred_check
        %p2054 = pneg %p188
      $region50: #{_dqn_forward_pallas.1} parent=47 // pred_check_branch
        %2056 = sbr.rel (%p2054) target = $region52
      $region51: #{_dqn_forward_pallas.1} parent=47 // pred_region
        _
      $region52: #{_dqn_forward_pallas.1} parent=47 // pred_fallthru
        _
    $region48: #{_dqn_forward_pallas.1} parent=5 // pred_fallthru
      _
    %p2057 = scmp.le.s32.totalorder 2, %s13
    // Predicated region
    $region53: #{_dqn_forward_pallas.1} parent=5 // pred_check
      %p2058 = pneg %p2057
    $region54: #{_dqn_forward_pallas.1} parent=5 // pred_check_branch
      %2060 = sbr.rel (%p2058) target = $region56
    $region55: #{_dqn_forward_pallas.1} parent=5 // pred_region
      %s2061 = ssub.s32 %s13, 2
      // Predicated region
      $region57: #{_dqn_forward_pallas.1} parent=55 // pred_check
        %p2062 = pneg %p194
      $region58: #{_dqn_forward_pallas.1} parent=55 // pred_check_branch
        %2064 = sbr.rel (%p2062) target = $region60
      $region59: #{_dqn_forward_pallas.1} parent=55 // pred_region
        %p2065 = scmp.lt.s32.totalorder %s19, 1
        %s2066 = scalar_select %p2065, %s19, 1
        %s2067 = smul.addr %s2066, 8
        %s2068 = scalar_lea.vmem %s7, %s2067
      $region60: #{_dqn_forward_pallas.1} parent=55 // pred_fallthru
        _
    $region56: #{_dqn_forward_pallas.1} parent=5 // pred_fallthru
      _
  $region6: #{_dqn_forward_pallas.1} parent=0 // loop_footer
    %s17 = sadd.s32 1, %s13
  $region7: #{_dqn_forward_pallas.1} parent=0 // loop_footer_branch
    %12 = sbr.rel target = $region3
  $region8: #{_dqn_forward_pallas.1} parent=0 // loop_exit
    _

</llo_original>
